<compile_context>
chip_gen: v6e
topology: v6e:2x2x1
jax: 0.10.0
libtpu: 0.0.40
codegen_flags: <defaults>
</compile_context>

<pallas_src>
import functools
import math

import numpy as np
import jax
import jax.numpy as jnp
from jax.experimental import pallas as pl
from jax.experimental.pallas import tpu as pltpu


def attention_kernel(x_ref, wqkv_ref, wproj_ref, bproj_ref, mask_ref,
                     o_ref, acc_ref, *, num_heads, head_dim, scale):
    C = num_heads * head_dim
    x = x_ref[0]                     # (N, C), input dtype (f32 or bf16)
    mask = mask_ref[...]             # (N, N) additive mask, f32 (0 / -inf)

    # Per-head attention; num_heads is small and static -> unrolled.
    for h in range(num_heads):
        lo = h * head_dim
        hi = lo + head_dim
        # Static, 128-aligned column slices of the fused qkv weight
        # (column layout matches the PyTorch reshape: [q | k | v], each
        # head-major with head_dim-wide blocks).
        wq = wqkv_ref[:, lo:hi]
        wk = wqkv_ref[:, C + lo:C + hi]
        wv = wqkv_ref[:, 2 * C + lo:2 * C + hi]

        # Matmuls in the input dtype with f32 accumulation on the MXU.
        q = jnp.dot(x, wq, preferred_element_type=jnp.float32)   # (N, Dh)
        k = jnp.dot(x, wk, preferred_element_type=jnp.float32)   # (N, Dh)
        v = jnp.dot(x, wv, preferred_element_type=jnp.float32)   # (N, Dh)

        s = jnp.dot(q, k.T, preferred_element_type=jnp.float32) * scale + mask
        m = jnp.max(s, axis=-1, keepdims=True)
        p = jnp.exp(s - m)
        p = p / jnp.sum(p, axis=-1, keepdims=True)
        acc_ref[:, lo:hi] = jnp.dot(p, v, preferred_element_type=jnp.float32)

    # Output projection over the concatenated heads (lane-dense (N, C) tile).
    out = jnp.dot(acc_ref[...].astype(x.dtype), wproj_ref[...],
                  preferred_element_type=jnp.float32)
    out = out + bproj_ref[...].astype(jnp.float32)
    o_ref[0] = out.astype(o_ref.dtype)


@functools.partial(jax.jit, static_argnames=("num_heads",))
def custom_attention_pallas(x, wqkv, wproj, bproj, mask, *, num_heads):
    """Fused FullAttention / BlockCausalAttention forward.

    x:     (B, N, C)
    wqkv:  (C, 3C)  pre-transposed qkv weight  (x @ wqkv == x @ Wqkv.T)
    wproj: (C, C)   pre-transposed proj weight
    bproj: (1, C)   proj bias
    mask:  (N, N)   additive f32 mask (0 keep / -inf masked); zeros == 'full'
    """
    B, N, C = x.shape
    assert C % num_heads == 0
    head_dim = C // num_heads
    # Lane/sublane-dense fast path.
    # TODO(synk): pad N to a multiple of 8 and C/head_dim to multiples of 128
    #             (with -inf padded key columns) for arbitrary shapes.
    assert N % 8 == 0 and C % 128 == 0 and head_dim % 128 == 0

    scale = float(head_dim) ** -0.5
    kernel = functools.partial(attention_kernel, num_heads=num_heads,
                               head_dim=head_dim, scale=scale)

    def nbytes(a):
        return a.size * a.dtype.itemsize

    cost = pl.CostEstimate(
        flops=(2 * B * N * C * 3 * C          # qkv projection
               + 4 * B * N * N * C            # q@k.T and p@v over all heads
               + 2 * B * N * C * C),          # output projection
        transcendentals=B * num_heads * N * N,
        bytes_accessed=(2 * nbytes(x) + nbytes(wqkv) + nbytes(wproj)
                        + nbytes(bproj) + nbytes(mask)),
    )

    return pl.pallas_call(
        kernel,
        out_shape=jax.ShapeDtypeStruct((B, N, C), x.dtype),
        grid_spec=pltpu.PrefetchScalarGridSpec(
            num_scalar_prefetch=0,
            grid=(B,),
            in_specs=[
                pl.BlockSpec((1, N, C), lambda b: (b, 0, 0)),      # x block
                pl.BlockSpec((C, 3 * C), lambda b: (0, 0)),        # Wqkv
                pl.BlockSpec((C, C), lambda b: (0, 0)),            # Wproj
                pl.BlockSpec((1, C), lambda b: (0, 0)),            # b_proj
                pl.BlockSpec((N, N), lambda b: (0, 0)),            # mask
            ],
            out_specs=pl.BlockSpec((1, N, C), lambda b: (b, 0, 0)),
            scratch_shapes=[pltpu.VMEM((N, C), jnp.float32)],
        ),
        compiler_params=pltpu.CompilerParams(
            # Batch tiles are independent -> v7x's two TensorCores split the
            # grid.  For production-sized N/C also raise vmem_limit_bytes.
            dimension_semantics=("parallel",)),
        cost_estimate=cost,
    )(x, wqkv, wproj, bproj, mask)


def block_causal_additive_mask(causal_mask_sizes, mask_diag=False):
    """Port of get_causal_mask(...) as an additive (-inf / 0) f32 mask."""
    ids = np.repeat(np.arange(len(causal_mask_sizes)), causal_mask_sizes)
    row, col = ids[:, None], ids[None, :]
    bool_mask = (row <= col) if mask_diag else (row < col)
    return jnp.where(jnp.asarray(bool_mask), -jnp.inf, 0.0).astype(jnp.float32)


def attention_ref(x, wqkv, wproj, bproj, mask, num_heads):
    """Pure-JAX reference mirroring the PyTorch forward math."""
    B, N, C = x.shape
    dh = C // num_heads
    qkv = jnp.einsum('bnc,cd->bnd', x, wqkv)
    qkv = qkv.reshape(B, N, 3, num_heads, dh).transpose(2, 0, 3, 1, 4)
    q, k, v = qkv[0], qkv[1], qkv[2]
    attn = jnp.einsum('bhnd,bhmd->bhnm', q, k) * (dh ** -0.5)
    attn = attn + mask[None, None]
    attn = jax.nn.softmax(attn, axis=-1)
    out = jnp.einsum('bhnm,bhmd->bhnd', attn, v)
    out = out.transpose(0, 2, 1, 3).reshape(B, N, C)
    return out @ wproj + bproj


if __name__ == "__main__":
    # Small shapes, lane-dense: head_dim = 256 // 2 = 128.
    B, N, C, num_heads = 2, 128, 256, 2

    key = jax.random.PRNGKey(0)
    k_x, k_qkv, k_pw, k_pb = jax.random.split(key, 4)

    x = jax.random.normal(k_x, (B, N, C), dtype=jnp.float32)

    # PyTorch-Linear-style uniform init, stored pre-transposed (in, out).
    bound = 1.0 / math.sqrt(C)
    wqkv = jax.random.uniform(k_qkv, (C, 3 * C), jnp.float32, -bound, bound)
    wproj = jax.random.uniform(k_pw, (C, C), jnp.float32, -bound, bound)
    bproj = jax.random.uniform(k_pb, (1, C), jnp.float32, -bound, bound)

    # block_type='full' (ctx_mask=None, noise=False): zero additive mask.
    zero_mask = jnp.zeros((N, N), jnp.float32)
    y_full = custom_attention_pallas(x, wqkv, wproj, bproj, zero_mask,
                                     num_heads=num_heads)
    y_full = jax.block_until_ready(y_full)
    ref_full = attention_ref(x, wqkv, wproj, bproj, zero_mask, num_heads)
    assert y_full.shape == (B, N, C)
    assert jnp.allclose(y_full, ref_full, atol=1e-4, rtol=1e-4)

    # block_type='block_causal': same kernel, block-causal additive mask.
    bc_mask = block_causal_additive_mask([32, 32, 32, 32])
    y_bc = custom_attention_pallas(x, wqkv, wproj, bproj, bc_mask,
                                   num_heads=num_heads)
    y_bc = jax.block_until_ready(y_bc)
    ref_bc = attention_ref(x, wqkv, wproj, bproj, bc_mask, num_heads)
    assert jnp.allclose(y_bc, ref_bc, atol=1e-4, rtol=1e-4)

    print("KERNEL_OK")
</pallas_src>

<mosaic_0001>
module attributes {stable_mosaic.version = 11 : i64} {
  func.func @attention_kernel(%arg0: i32, %arg1: memref<1x128x256xf32, #tpu.memory_space<vmem>>, %arg2: memref<256x768xf32, #tpu.memory_space<vmem>>, %arg3: memref<256x256xf32, #tpu.memory_space<vmem>>, %arg4: memref<1x256xf32, #tpu.memory_space<vmem>>, %arg5: memref<128x128xf32, #tpu.memory_space<vmem>>, %arg6: memref<1x128x256xf32, #tpu.memory_space<vmem>>, %arg7: memref<128x256xf32, #tpu.memory_space<vmem>>) attributes {dimension_semantics = [#tpu.dimension_semantics<parallel>], iteration_bounds = array<i64: 2>, scalar_prefetch = 0 : i64, scratch_operands = 1 : i64, tpu.core_type = #tpu.core_type<tc>, window_params = [{transform_indices = @transform_0, window_bounds = array<i64: 1, 128, 256>}, {pipeline_mode = #tpu.pipeline_mode<synchronous>, transform_indices = @transform_1, window_bounds = array<i64: 256, 768>}, {pipeline_mode = #tpu.pipeline_mode<synchronous>, transform_indices = @transform_2, window_bounds = array<i64: 256, 256>}, {pipeline_mode = #tpu.pipeline_mode<synchronous>, transform_indices = @transform_3, window_bounds = array<i64: 1, 256>}, {pipeline_mode = #tpu.pipeline_mode<synchronous>, transform_indices = @transform_4, window_bounds = array<i64: 128, 128>}, {transform_indices = @transform_5, window_bounds = array<i64: 1, 128, 256>}]} {
    %c0 = arith.constant 0 : index
    %c0_0 = arith.constant 0 : index
    %c0_1 = arith.constant 0 : index
    %0 = vector.load %arg1[%c0, %c0_0, %c0_1] : memref<1x128x256xf32, #tpu.memory_space<vmem>>, vector<1x128x256xf32>
    %1 = vector.shape_cast %0 : vector<1x128x256xf32> to vector<128x256xf32>
    %c0_2 = arith.constant 0 : index
    %c0_3 = arith.constant 0 : index
    %2 = vector.load %arg5[%c0_2, %c0_3] : memref<128x128xf32, #tpu.memory_space<vmem>>, vector<128x128xf32>
    %c0_4 = arith.constant 0 : index
    %c0_5 = arith.constant 0 : index
    %3 = vector.load %arg2[%c0_4, %c0_5] : memref<256x768xf32, #tpu.memory_space<vmem>>, vector<256x128xf32>
    %c0_6 = arith.constant 0 : index
    %c256 = arith.constant 256 : index
    %4 = vector.load %arg2[%c0_6, %c256] : memref<256x768xf32, #tpu.memory_space<vmem>>, vector<256x128xf32>
    %c0_7 = arith.constant 0 : index
    %c512 = arith.constant 512 : index
    %5 = vector.load %arg2[%c0_7, %c512] : memref<256x768xf32, #tpu.memory_space<vmem>>, vector<256x128xf32>
    %cst = arith.constant dense<0.000000e+00> : vector<128x128xf32>
    %6 = tpu.matmul %1, %3, %cst {dimension_numbers = #tpu.dot_dimension_numbers<[1], [0], [0], [1], [0, 0, 1, 1], [], []>} : vector<128x256xf32>, vector<256x128xf32>, vector<128x128xf32> -> vector<128x128xf32>
    %cst_8 = arith.constant dense<0.000000e+00> : vector<128x128xf32>
    %7 = tpu.matmul %1, %4, %cst_8 {dimension_numbers = #tpu.dot_dimension_numbers<[1], [0], [0], [1], [0, 0, 1, 1], [], []>} : vector<128x256xf32>, vector<256x128xf32>, vector<128x128xf32> -> vector<128x128xf32>
    %cst_9 = arith.constant dense<0.000000e+00> : vector<128x128xf32>
    %8 = tpu.matmul %1, %5, %cst_9 {dimension_numbers = #tpu.dot_dimension_numbers<[1], [0], [0], [1], [0, 0, 1, 1], [], []>} : vector<128x256xf32>, vector<256x128xf32>, vector<128x128xf32> -> vector<128x128xf32>
    %9 = tpu.transpose %7, [1, 0] : vector<128x128xf32> -> vector<128x128xf32>
    %cst_10 = arith.constant dense<0.000000e+00> : vector<128x128xf32>
    %10 = tpu.matmul %6, %9, %cst_10 {dimension_numbers = #tpu.dot_dimension_numbers<[1], [0], [0], [1], [0, 0, 1, 1], [], []>} : vector<128x128xf32>, vector<128x128xf32>, vector<128x128xf32> -> vector<128x128xf32>
    %cst_11 = arith.constant 0.0883883461 : f32
    %11 = vector.broadcast %cst_11 : f32 to vector<128x128xf32>
    %12 = arith.mulf %10, %11 : vector<128x128xf32>
    %13 = arith.addf %12, %2 : vector<128x128xf32>
    %cst_12 = arith.constant dense<0xFF800000> : vector<128xf32>
    %14 = vector.multi_reduction <maximumf>, %13, %cst_12 [1] : vector<128x128xf32> to vector<128xf32>
    %15 = vector.shape_cast %14 : vector<128xf32> to vector<128x1xf32>
    %16 = vector.broadcast %15 : vector<128x1xf32> to vector<128x128xf32>
    %17 = arith.subf %13, %16 : vector<128x128xf32>
    %18 = math.exp %17 : vector<128x128xf32>
    %cst_13 = arith.constant dense<0.000000e+00> : vector<128xf32>
    %19 = vector.multi_reduction <add>, %18, %cst_13 [1] : vector<128x128xf32> to vector<128xf32>
    %20 = vector.shape_cast %19 : vector<128xf32> to vector<128x1xf32>
    %21 = vector.broadcast %20 : vector<128x1xf32> to vector<128x128xf32>
    %22 = arith.divf %18, %21 : vector<128x128xf32>
    %cst_14 = arith.constant dense<0.000000e+00> : vector<128x128xf32>
    %23 = tpu.matmul %22, %8, %cst_14 {dimension_numbers = #tpu.dot_dimension_numbers<[1], [0], [0], [1], [0, 0, 1, 1], [], []>} : vector<128x128xf32>, vector<128x128xf32>, vector<128x128xf32> -> vector<128x128xf32>
    %c0_15 = arith.constant 0 : index
    %c0_16 = arith.constant 0 : index
    %24 = vector.load %arg7[%c0_15, %c0_16] : memref<128x256xf32, #tpu.memory_space<vmem>>, vector<128x128xf32>
    tpu.vector_store %arg7[%c0_15, %c0_16], %23 {strides = array<i32>} : memref<128x256xf32, #tpu.memory_space<vmem>>, vector<128x128xf32>,
    %c0_17 = arith.constant 0 : index
    %c128 = arith.constant 128 : index
    %25 = vector.load %arg2[%c0_17, %c128] : memref<256x768xf32, #tpu.memory_space<vmem>>, vector<256x128xf32>
    %c0_18 = arith.constant 0 : index
    %c384 = arith.constant 384 : index
    %26 = vector.load %arg2[%c0_18, %c384] : memref<256x768xf32, #tpu.memory_space<vmem>>, vector<256x128xf32>
    %c0_19 = arith.constant 0 : index
    %c640 = arith.constant 640 : index
    %27 = vector.load %arg2[%c0_19, %c640] : memref<256x768xf32, #tpu.memory_space<vmem>>, vector<256x128xf32>
    %cst_20 = arith.constant dense<0.000000e+00> : vector<128x128xf32>
    %28 = tpu.matmul %1, %25, %cst_20 {dimension_numbers = #tpu.dot_dimension_numbers<[1], [0], [0], [1], [0, 0, 1, 1], [], []>} : vector<128x256xf32>, vector<256x128xf32>, vector<128x128xf32> -> vector<128x128xf32>
    %cst_21 = arith.constant dense<0.000000e+00> : vector<128x128xf32>
    %29 = tpu.matmul %1, %26, %cst_21 {dimension_numbers = #tpu.dot_dimension_numbers<[1], [0], [0], [1], [0, 0, 1, 1], [], []>} : vector<128x256xf32>, vector<256x128xf32>, vector<128x128xf32> -> vector<128x128xf32>
    %cst_22 = arith.constant dense<0.000000e+00> : vector<128x128xf32>
    %30 = tpu.matmul %1, %27, %cst_22 {dimension_numbers = #tpu.dot_dimension_numbers<[1], [0], [0], [1], [0, 0, 1, 1], [], []>} : vector<128x256xf32>, vector<256x128xf32>, vector<128x128xf32> -> vector<128x128xf32>
    %31 = tpu.transpose %29, [1, 0] : vector<128x128xf32> -> vector<128x128xf32>
    %cst_23 = arith.constant dense<0.000000e+00> : vector<128x128xf32>
    %32 = tpu.matmul %28, %31, %cst_23 {dimension_numbers = #tpu.dot_dimension_numbers<[1], [0], [0], [1], [0, 0, 1, 1], [], []>} : vector<128x128xf32>, vector<128x128xf32>, vector<128x128xf32> -> vector<128x128xf32>
    %cst_24 = arith.constant 0.0883883461 : f32
    %33 = vector.broadcast %cst_24 : f32 to vector<128x128xf32>
    %34 = arith.mulf %32, %33 : vector<128x128xf32>
    %35 = arith.addf %34, %2 : vector<128x128xf32>
    %cst_25 = arith.constant dense<0xFF800000> : vector<128xf32>
    %36 = vector.multi_reduction <maximumf>, %35, %cst_25 [1] : vector<128x128xf32> to vector<128xf32>
    %37 = vector.shape_cast %36 : vector<128xf32> to vector<128x1xf32>
    %38 = vector.broadcast %37 : vector<128x1xf32> to vector<128x128xf32>
    %39 = arith.subf %35, %38 : vector<128x128xf32>
    %40 = math.exp %39 : vector<128x128xf32>
    %cst_26 = arith.constant dense<0.000000e+00> : vector<128xf32>
    %41 = vector.multi_reduction <add>, %40, %cst_26 [1] : vector<128x128xf32> to vector<128xf32>
    %42 = vector.shape_cast %41 : vector<128xf32> to vector<128x1xf32>
    %43 = vector.broadcast %42 : vector<128x1xf32> to vector<128x128xf32>
    %44 = arith.divf %40, %43 : vector<128x128xf32>
    %cst_27 = arith.constant dense<0.000000e+00> : vector<128x128xf32>
    %45 = tpu.matmul %44, %30, %cst_27 {dimension_numbers = #tpu.dot_dimension_numbers<[1], [0], [0], [1], [0, 0, 1, 1], [], []>} : vector<128x128xf32>, vector<128x128xf32>, vector<128x128xf32> -> vector<128x128xf32>
    %c0_28 = arith.constant 0 : index
    %c128_29 = arith.constant 128 : index
    %46 = vector.load %arg7[%c0_28, %c128_29] : memref<128x256xf32, #tpu.memory_space<vmem>>, vector<128x128xf32>
    tpu.vector_store %arg7[%c0_28, %c128_29], %45 {strides = array<i32>} : memref<128x256xf32, #tpu.memory_space<vmem>>, vector<128x128xf32>,
    %c0_30 = arith.constant 0 : index
    %c0_31 = arith.constant 0 : index
    %47 = vector.load %arg7[%c0_30, %c0_31] : memref<128x256xf32, #tpu.memory_space<vmem>>, vector<128x256xf32>
    %c0_32 = arith.constant 0 : index
    %c0_33 = arith.constant 0 : index
    %48 = vector.load %arg3[%c0_32, %c0_33] : memref<256x256xf32, #tpu.memory_space<vmem>>, vector<256x256xf32>
    %cst_34 = arith.constant dense<0.000000e+00> : vector<128x256xf32>
    %49 = tpu.matmul %47, %48, %cst_34 {dimension_numbers = #tpu.dot_dimension_numbers<[1], [0], [0], [1], [0, 0, 1, 1], [], []>} : vector<128x256xf32>, vector<256x256xf32>, vector<128x256xf32> -> vector<128x256xf32>
    %c0_35 = arith.constant 0 : index
    %c0_36 = arith.constant 0 : index
    %50 = vector.load %arg4[%c0_35, %c0_36] : memref<1x256xf32, #tpu.memory_space<vmem>>, vector<1x256xf32>
    %51 = vector.broadcast %50 : vector<1x256xf32> to vector<128x256xf32>
    %52 = arith.addf %49, %51 : vector<128x256xf32>
    %c0_37 = arith.constant 0 : index
    %c0_38 = arith.constant 0 : index
    %c0_39 = arith.constant 0 : index
    %53 = vector.load %arg6[%c0_37, %c0_38, %c0_39] : memref<1x128x256xf32, #tpu.memory_space<vmem>>, vector<1x128x256xf32>
    %54 = vector.shape_cast %53 : vector<1x128x256xf32> to vector<128x256xf32>
    %55 = vector.shape_cast %52 : vector<128x256xf32> to vector<1x128x256xf32>
    tpu.vector_store %arg6[%c0_37, %c0_38, %c0_39], %55 {strides = array<i32>} : memref<1x128x256xf32, #tpu.memory_space<vmem>>, vector<1x128x256xf32>,
    return
  }
  func.func @transform_0(%arg0: i32) -> (i32, i32, i32) {
    %c0_i32 = arith.constant 0 : i32
    %c0_i32_0 = arith.constant 0 : i32
    %c0_i32_1 = arith.constant 0 : i32
    return %arg0, %c0_i32, %c0_i32_0 : i32, i32, i32
  }
  func.func @transform_1(%arg0: i32) -> (i32, i32) {
    %c0_i32 = arith.constant 0 : i32
    %c0_i32_0 = arith.constant 0 : i32
    %c0_i32_1 = arith.constant 0 : i32
    return %c0_i32, %c0_i32_0 : i32, i32
  }
  func.func @transform_2(%arg0: i32) -> (i32, i32) {
    %c0_i32 = arith.constant 0 : i32
    %c0_i32_0 = arith.constant 0 : i32
    %c0_i32_1 = arith.constant 0 : i32
    return %c0_i32, %c0_i32_0 : i32, i32
  }
  func.func @transform_3(%arg0: i32) -> (i32, i32) {
    %c0_i32 = arith.constant 0 : i32
    %c0_i32_0 = arith.constant 0 : i32
    %c0_i32_1 = arith.constant 0 : i32
    return %c0_i32, %c0_i32_0 : i32, i32
  }
  func.func @transform_4(%arg0: i32) -> (i32, i32) {
    %c0_i32 = arith.constant 0 : i32
    %c0_i32_0 = arith.constant 0 : i32
    %c0_i32_1 = arith.constant 0 : i32
    return %c0_i32, %c0_i32_0 : i32, i32
  }
  func.func @transform_5(%arg0: i32) -> (i32, i32, i32) {
    %c0_i32 = arith.constant 0 : i32
    %c0_i32_0 = arith.constant 0 : i32
    %c0_i32_1 = arith.constant 0 : i32
    return %arg0, %c0_i32, %c0_i32_0 : i32, i32, i32
  }
}

</mosaic_0001>

<llo_original>
// kernel: custom_attention_pallas.1
$region0: #{custom_attention_pallas.1}
  #allocation0 [shape = 'u32[]', space=smem, size = 0x4, offset = 0x4, fixed_abs, tag = 'smem constant byte address 0x4 - core index']
  #allocation1 [shape = 'u32[144,128]{1,0:T(1,128)}', space=vmem, size = 0x12000, scoped, tag = 'internal scratch']
  #allocation2 [shape = 'f32[128,256]{1,0:T(8,128)}', space=vmem, size = 0x20000, scoped, tag = 'scratch operand']
  %s0 = inlined_call_operand.hbm [shape: f32[2,128,256], index: 0, kind: input, shape index: {}]
  %s1 = inlined_call_operand.hbm [shape: f32[256,768], index: 1, kind: input, shape index: {}]
  %s2 = inlined_call_operand.hbm [shape: f32[256,256], index: 2, kind: input, shape index: {}]
  %s3 = inlined_call_operand.vmem [shape: f32[1,256], index: 3, kind: input, shape index: {}]
  %s4 = inlined_call_operand.hbm [shape: f32[128,128], index: 4, kind: input, shape index: {}]
  %s5 = inlined_call_operand.hbm [shape: f32[2,128,256], index: 5, kind: output, shape index: {}]
  %s6 = sld [smem:[#allocation0]]
  $region69: #{custom_attention_pallas.1} parent=0
    _
  %s8 = ssub.s32 1, %s6
  %s9 = scalar_select 0, %s8, %s6
  $region1: #{custom_attention_pallas.1} parent=0
    #allocation3 [shape = 'u8[262144]{0}', space=vmem, size = 0x40000, scoped, tag = 'input window, operand 0']
    #allocation4 [shape = 's32[2]{0}', space=sflag, size = 0x8, scoped, tag = 'scoped memory for custom_attention_pallas.1']
    #allocation5 [shape = 's32[2]{0}', space=sflag, size = 0x8, scoped, tag = 'scoped memory for custom_attention_pallas.1']
    #allocation6 [shape = 'u8[786432]{0}', space=vmem, size = 0xc0000, scoped, tag = 'input window, operand 1, single buffered']
    #allocation7 [shape = 's32[1]{0}', space=sflag, size = 0x4, scoped, tag = 'scoped memory for custom_attention_pallas.1']
    #allocation8 [shape = 'u8[262144]{0}', space=vmem, size = 0x40000, scoped, tag = 'input window, operand 2, single buffered']
    #allocation9 [shape = 'u8[65536]{0}', space=vmem, size = 0x10000, scoped, tag = 'input window, operand 4, single buffered']
    #allocation10 [shape = 's32[1]{0}', space=sflag, size = 0x4, scoped, tag = 'scoped memory for custom_attention_pallas.1']
    #allocation11 [shape = 'u8[262144]{0}', space=vmem, size = 0x40000, scoped, tag = 'output window, operand 0']
    %10 = vsyncpa [#allocation4], 0
    %s11 = scalar_lea.sflag [#allocation4], 1
    %12 = vsyncpa %s11, 0
    %13 = vsyncpa [#allocation7], 0
    %14 = vsyncpa [#allocation10], 0
    %15 = vsyncpa [#allocation5], 0
    %s16 = scalar_lea.sflag [#allocation5], 1
    %17 = vsyncpa %s16, 0
    loop: start=0, step=1, limit=4
    $region2: #{custom_attention_pallas.1} parent=1 // loop_pre_header
      _
    $region3: #{custom_attention_pallas.1} parent=1 // loop_header
      %s19 = sphi 0, %s23
      %p20 = scmp.ge.s32.totalorder %s19, 4
      %s29 = sphi 0, %s31
      %s32 = sphi 0, %s29
      %s33 = sphi 0, %s32
      %s49 = sphi 0, %s33
      %s53 = sphi 0, %s53
      %s55 = sphi 0, %s53
      %s56 = sphi 0, %s55
      %s70 = sphi 0, %s56
      %s74 = sphi 0, %s74
      %s76 = sphi 0, %s74
      %s77 = sphi 0, %s76
      %s91 = sphi 0, %s77
      %s95 = sphi 0, %s95
      %s97 = sphi 0, %s95
      %s98 = sphi 0, %s97
      %s112 = sphi 0, %s98
      %s116 = sphi 0, %s116
      %s118 = sphi 0, %s116
      %s119 = sphi 0, %s118
      %s133 = sphi 0, %s119
      %s139 = sphi 0, %s141
      %s142 = sphi 0, %s139
      %s143 = sphi 0, %s142
      %s159 = sphi 0, %s143
    $region4: #{custom_attention_pallas.1} parent=1 // loop_header_branch
      %22 = sbr.rel (%p20) target = $region8
    $region5: #{custom_attention_pallas.1} parent=1 // loop_body
      %s24 = ssub.s32 %s19, 1
      %s25 = ssub.s32 %s19, 2
      %s26 = sadd.s32 %s19, 1
      %s27 = ssub.s32 %s19, %s26
      %p28 = scmp.eq.s32.totalorder %s27, 0
      %s30 = sadd.s32 %s29, 1
      %s31 = scalar_select %p28, %s29, %s30
      %p34 = pneg %p28
      %p35 = scmp.eq.s32.totalorder %s19, 1
      %p36 = por %p34, %p35
      %p37 = scmp.ne.s32.totalorder %s29, %s32
      %p38 = scmp.eq.s32.totalorder %s19, 0
      %p39 = por %p37, %p38
      %p40 = scmp.ne.s32.totalorder %s29, %s32
      %p41 = scmp.eq.s32.totalorder %s24, 1
      %p42 = por %p40, %p41
      %p43 = scmp.ne.s32.totalorder %s32, %s33
      %p44 = scmp.eq.s32.totalorder %s24, 0
      %p45 = por %p43, %p44
      %p46 = scmp.ne.s32.totalorder %s32, %s33
      %p47 = scmp.eq.s32.totalorder %s25, 1
      %p48 = por %p46, %p47
      %p50 = scmp.ne.s32.totalorder %s33, %s49
      %p51 = scmp.eq.s32.totalorder %s25, 0
      %p52 = por %p50, %p51
      %s54 = sadd.s32 %s53, 1
      %p57 = scmp.eq.s32.totalorder %s19, 1
      %p58 = scmp.ne.s32.totalorder %s53, %s55
      %p59 = scmp.eq.s32.totalorder %s19, 0
      %p60 = por %p58, %p59
      %p61 = scmp.ne.s32.totalorder %s53, %s55
      %p62 = scmp.eq.s32.totalorder %s24, 1
      %p63 = por %p61, %p62
      %p64 = scmp.ne.s32.totalorder %s55, %s56
      %p65 = scmp.eq.s32.totalorder %s24, 0
      %p66 = por %p64, %p65
      %p67 = scmp.ne.s32.totalorder %s55, %s56
      %p68 = scmp.eq.s32.totalorder %s25, 1
      %p69 = por %p67, %p68
      %p71 = scmp.ne.s32.totalorder %s56, %s70
      %p72 = scmp.eq.s32.totalorder %s25, 0
      %p73 = por %p71, %p72
      %s75 = sadd.s32 %s74, 1
      %p78 = scmp.eq.s32.totalorder %s19, 1
      %p79 = scmp.ne.s32.totalorder %s74, %s76
      %p80 = scmp.eq.s32.totalorder %s19, 0
      %p81 = por %p79, %p80
      %p82 = scmp.ne.s32.totalorder %s74, %s76
      %p83 = scmp.eq.s32.totalorder %s24, 1
      %p84 = por %p82, %p83
      %p85 = scmp.ne.s32.totalorder %s76, %s77
      %p86 = scmp.eq.s32.totalorder %s24, 0
      %p87 = por %p85, %p86
      %p88 = scmp.ne.s32.totalorder %s76, %s77
      %p89 = scmp.eq.s32.totalorder %s25, 1
      %p90 = por %p88, %p89
      %p92 = scmp.ne.s32.totalorder %s77, %s91
      %p93 = scmp.eq.s32.totalorder %s25, 0
      %p94 = por %p92, %p93
      %s96 = sadd.s32 %s95, 1
      %p99 = scmp.eq.s32.totalorder %s19, 1
      %p100 = scmp.ne.s32.totalorder %s95, %s97
      %p101 = scmp.eq.s32.totalorder %s19, 0
      %p102 = por %p100, %p101
      %p103 = scmp.ne.s32.totalorder %s95, %s97
      %p104 = scmp.eq.s32.totalorder %s24, 1
      %p105 = por %p103, %p104
      %p106 = scmp.ne.s32.totalorder %s97, %s98
      %p107 = scmp.eq.s32.totalorder %s24, 0
      %p108 = por %p106, %p107
      %p109 = scmp.ne.s32.totalorder %s97, %s98
      %p110 = scmp.eq.s32.totalorder %s25, 1
      %p111 = por %p109, %p110
      %p113 = scmp.ne.s32.totalorder %s98, %s112
      %p114 = scmp.eq.s32.totalorder %s25, 0
      %p115 = por %p113, %p114
      %s117 = sadd.s32 %s116, 1
      %p120 = scmp.eq.s32.totalorder %s19, 1
      %p121 = scmp.ne.s32.totalorder %s116, %s118
      %p122 = scmp.eq.s32.totalorder %s19, 0
      %p123 = por %p121, %p122
      %p124 = scmp.ne.s32.totalorder %s116, %s118
      %p125 = scmp.eq.s32.totalorder %s24, 1
      %p126 = por %p124, %p125
      %p127 = scmp.ne.s32.totalorder %s118, %s119
      %p128 = scmp.eq.s32.totalorder %s24, 0
      %p129 = por %p127, %p128
      %p130 = scmp.ne.s32.totalorder %s118, %s119
      %p131 = scmp.eq.s32.totalorder %s25, 1
      %p132 = por %p130, %p131
      %p134 = scmp.ne.s32.totalorder %s119, %s133
      %p135 = scmp.eq.s32.totalorder %s25, 0
      %p136 = por %p134, %p135
      %s137 = ssub.s32 %s19, %s26
      %p138 = scmp.eq.s32.totalorder %s137, 0
      %s140 = sadd.s32 %s139, 1
      %s141 = scalar_select %p138, %s139, %s140
      %p144 = pneg %p138
      %p145 = scmp.eq.s32.totalorder %s19, 1
      %p146 = por %p144, %p145
      %p147 = scmp.ne.s32.totalorder %s139, %s142
      %p148 = scmp.eq.s32.totalorder %s19, 0
      %p149 = por %p147, %p148
      %p150 = scmp.ne.s32.totalorder %s139, %s142
      %p151 = scmp.eq.s32.totalorder %s24, 1
      %p152 = por %p150, %p151
      %p153 = scmp.ne.s32.totalorder %s142, %s143
      %p154 = scmp.eq.s32.totalorder %s24, 0
      %p155 = por %p153, %p154
      %p156 = scmp.ne.s32.totalorder %s142, %s143
      %p157 = scmp.eq.s32.totalorder %s25, 1
      %p158 = por %p156, %p157
      %p160 = scmp.ne.s32.totalorder %s143, %s159
      %p161 = scmp.eq.s32.totalorder %s25, 0
      %p162 = por %p160, %p161
      %p163 = scmp.le.s32.totalorder 1, %s19
      %p164 = scmp.lt.s32.totalorder %s19, 3
      %p165 = pnand %p163, %p164
      %p166 = pneg %p165
      // Predicated region
      $region9: #{custom_attention_pallas.1} parent=5 // pred_check
        _
      $region10: #{custom_attention_pallas.1} parent=5 // pred_check_branch
        %168 = sbr.rel (%p165) target = $region12
      $region11: #{custom_attention_pallas.1} parent=5 // pred_region
        %s169 = ssub.s32 %s19, 1
        // Predicated region
        $region13: #{custom_attention_pallas.1} parent=11 // pred_check
          %p170 = pneg %p66
        $region14: #{custom_attention_pallas.1} parent=11 // pred_check_branch
          %172 = sbr.rel (%p170) target = $region16
        $region15: #{custom_attention_pallas.1} parent=11 // pred_region
          %s174 = ssub.s32 24576, 24576
          %175 = vsyncadd [#allocation7], %s174
          %s176 = sshll.u32 [#allocation6], 4
          %s177 = int_to_ptr.vmem [resolvable:$true] %s176
          %182 = dma.hbm_to_vmem [thread:$0]  %s1, 24576, %s177, [#allocation7], 768, 768, 48
        $region16: #{custom_attention_pallas.1} parent=11 // pred_fallthru
          _
        // Predicated region
        $region17: #{custom_attention_pallas.1} parent=11 // pred_check
          %p183 = pneg %p87
        $region18: #{custom_attention_pallas.1} parent=11 // pred_check_branch
          %185 = sbr.rel (%p183) target = $region20
        $region19: #{custom_attention_pallas.1} parent=11 // pred_region
          %s187 = ssub.s32 8192, 8192
          %188 = vsyncadd [#allocation7], %s187
          %s189 = sshll.u32 [#allocation8], 4
          %s190 = int_to_ptr.vmem [resolvable:$true] %s189
          %195 = dma.hbm_to_vmem [thread:$0]  %s2, 8192, %s190, [#allocation7], 256, 256, 16
        $region20: #{custom_attention_pallas.1} parent=11 // pred_fallthru
          _
        // Predicated region
        $region21: #{custom_attention_pallas.1} parent=11 // pred_check
          %p196 = pneg %p108
        $region22: #{custom_attention_pallas.1} parent=11 // pred_check_branch
          %198 = sbr.rel (%p196) target = $region24
        $region23: #{custom_attention_pallas.1} parent=11 // pred_region
          _
        $region24: #{custom_attention_pallas.1} parent=11 // pred_fallthru
          _
        // Predicated region
        $region25: #{custom_attention_pallas.1} parent=11 // pred_check
          %p199 = pneg %p129
        $region26: #{custom_attention_pallas.1} parent=11 // pred_check_branch
          %201 = sbr.rel (%p199) target = $region28
        $region27: #{custom_attention_pallas.1} parent=11 // pred_region
          %s203 = ssub.s32 2048, 2048
          %204 = vsyncadd [#allocation10], %s203
          %s205 = sshll.u32 [#allocation9], 4
          %s206 = int_to_ptr.vmem [resolvable:$true] %s205
          %211 = dma.hbm_to_vmem [thread:$0]  %s4, 2048, %s206, [#allocation10], 128, 128, 8
        $region28: #{custom_attention_pallas.1} parent=11 // pred_fallthru
          _
      $region12: #{custom_attention_pallas.1} parent=5 // pred_fallthru
        _
      %p212 = scmp.lt.s32.totalorder %s19, 2
      // Predicated region
      $region29: #{custom_attention_pallas.1} parent=5 // pred_check
        %p213 = pneg %p212
      $region30: #{custom_attention_pallas.1} parent=5 // pred_check_branch
        %215 = sbr.rel (%p213) target = $region32
      $region31: #{custom_attention_pallas.1} parent=5 // pred_region
        // Predicated region
        $region33: #{custom_attention_pallas.1} parent=31 // pred_check
          %p216 = pneg %p39
        $region34: #{custom_attention_pallas.1} parent=31 // pred_check_branch
          %218 = sbr.rel (%p216) target = $region36
        $region35: #{custom_attention_pallas.1} parent=31 // pred_region
          %s219 = sand.u32 %s29, 1
          %s220 = scalar_lea.sflag [#allocation4], %s219
          %s221 = sand.u32 %s29, 1
          %s222 = smul.addr %s221, 256
          %s223 = scalar_lea.vmem [#allocation3], %s222
          %s225 = ssub.s32 4096, 4096
          %226 = vsyncadd %s220, %s225
          %s227 = smul.addr %s19, 32
          %s228 = smul.addr %s227, 128
          %s229 = scalar_lea.hbm %s0, %s228
          %s230 = sshll.u32 %s223, 4
          %s231 = int_to_ptr.vmem [resolvable:$true] %s230
          %236 = dma.hbm_to_vmem [thread:$0]  %s229, 4096, %s231, %s220, 256, 256, 16
        $region36: #{custom_attention_pallas.1} parent=31 // pred_fallthru
          _
      $region32: #{custom_attention_pallas.1} parent=5 // pred_fallthru
        _
      %p237 = scmp.le.s32.totalorder 1, %s19
      %p238 = scmp.lt.s32.totalorder %s19, 3
      %p239 = pnand %p237, %p238
      %p240 = pneg %p239
      // Predicated region
      $region37: #{custom_attention_pallas.1} parent=5 // pred_check
        _
      $region38: #{custom_attention_pallas.1} parent=5 // pred_check_branch
        %242 = sbr.rel (%p239) target = $region40
      $region39: #{custom_attention_pallas.1} parent=5 // pred_region
        %s243 = ssub.s32 %s19, 1
        %s244 = sand.u32 %s32, 1
        %s245 = scalar_lea.sflag [#allocation4], %s244
        %s246 = sand.u32 %s32, 1
        %s247 = smul.addr %s246, 256
        %s248 = scalar_lea.vmem [#allocation3], %s247
        // Predicated region
        $region41: #{custom_attention_pallas.1} parent=39 // pred_check
          %p249 = pneg %p45
        $region42: #{custom_attention_pallas.1} parent=39 // pred_check_branch
          %251 = sbr.rel (%p249) target = $region44
        $region43: #{custom_attention_pallas.1} parent=39 // pred_region
          %252 = dma.done %s245, 4096
        $region44: #{custom_attention_pallas.1} parent=39 // pred_fallthru
          _
        // Predicated region
        $region45: #{custom_attention_pallas.1} parent=39 // pred_check
          %p253 = pneg %p66
        $region46: #{custom_attention_pallas.1} parent=39 // pred_check_branch
          %255 = sbr.rel (%p253) target = $region48
        $region47: #{custom_attention_pallas.1} parent=39 // pred_region
          %256 = dma.done [#allocation7], 24576
        $region48: #{custom_attention_pallas.1} parent=39 // pred_fallthru
          _
        // Predicated region
        $region49: #{custom_attention_pallas.1} parent=39 // pred_check
          %p257 = pneg %p87
        $region50: #{custom_attention_pallas.1} parent=39 // pred_check_branch
          %259 = sbr.rel (%p257) target = $region52
        $region51: #{custom_attention_pallas.1} parent=39 // pred_region
          %260 = dma.done [#allocation7], 8192
        $region52: #{custom_attention_pallas.1} parent=39 // pred_fallthru
          _
        // Predicated region
        $region53: #{custom_attention_pallas.1} parent=39 // pred_check
          %p261 = pneg %p129
        $region54: #{custom_attention_pallas.1} parent=39 // pred_check_branch
          %263 = sbr.rel (%p261) target = $region56
        $region55: #{custom_attention_pallas.1} parent=39 // pred_region
          %264 = dma.done [#allocation10], 2048
        $region56: #{custom_attention_pallas.1} parent=39 // pred_fallthru
          _
        %s265 = sand.u32 %s32, 1
        %s266 = scalar_lea.sflag [#allocation4], %s265
        %s267 = sand.u32 %s32, 1
        %s268 = smul.addr %s267, 256
        %s269 = scalar_lea.vmem [#allocation3], %s268
        %p270 = pneg %p45
        %p271 = pneg %p42
        %p272 = pneg %p66
        %p273 = pneg %p63
        %p274 = pneg %p87
        %p275 = pneg %p84
        %p276 = pneg %p108
        %p277 = pneg %p105
        %p278 = pneg %p129
        %p279 = pneg %p126
        %p280 = pneg %p155
        %p281 = pneg %p152
        %s282 = sand.u32 %s142, 1
        %s283 = scalar_lea.sflag [#allocation5], %s282
        %s284 = sand.u32 %s142, 1
        %s285 = smul.addr %s284, 256
        %s286 = scalar_lea.vmem [#allocation11], %s285
        %v287 = vld [vmem:[%s248] sm:$0xff]
        %v288 = vld [vmem:[%s248 + $0x8] sm:$0xff]
        %v289 = vld [vmem:[%s248 + $0x10] sm:$0xff]
        %v290 = vld [vmem:[%s248 + $0x18] sm:$0xff]
        %v291 = vld [vmem:[%s248 + $0x20] sm:$0xff]
        %v292 = vld [vmem:[%s248 + $0x28] sm:$0xff]
        %v293 = vld [vmem:[%s248 + $0x30] sm:$0xff]
        %v294 = vld [vmem:[%s248 + $0x38] sm:$0xff]
        %v295 = vld [vmem:[%s248 + $0x40] sm:$0xff]
        %v296 = vld [vmem:[%s248 + $0x48] sm:$0xff]
        %v297 = vld [vmem:[%s248 + $0x50] sm:$0xff]
        %v298 = vld [vmem:[%s248 + $0x58] sm:$0xff]
        %v299 = vld [vmem:[%s248 + $0x60] sm:$0xff]
        %v300 = vld [vmem:[%s248 + $0x68] sm:$0xff]
        %v301 = vld [vmem:[%s248 + $0x70] sm:$0xff]
        %v302 = vld [vmem:[%s248 + $0x78] sm:$0xff]
        %v303 = vld [vmem:[%s248 + $0x80] sm:$0xff]
        %v304 = vld [vmem:[%s248 + $0x88] sm:$0xff]
        %v305 = vld [vmem:[%s248 + $0x90] sm:$0xff]
        %v306 = vld [vmem:[%s248 + $0x98] sm:$0xff]
        %v307 = vld [vmem:[%s248 + $0xa0] sm:$0xff]
        %v308 = vld [vmem:[%s248 + $0xa8] sm:$0xff]
        %v309 = vld [vmem:[%s248 + $0xb0] sm:$0xff]
        %v310 = vld [vmem:[%s248 + $0xb8] sm:$0xff]
        %v311 = vld [vmem:[%s248 + $0xc0] sm:$0xff]
        %v312 = vld [vmem:[%s248 + $0xc8] sm:$0xff]
        %v313 = vld [vmem:[%s248 + $0xd0] sm:$0xff]
        %v314 = vld [vmem:[%s248 + $0xd8] sm:$0xff]
        %v315 = vld [vmem:[%s248 + $0xe0] sm:$0xff]
        %v316 = vld [vmem:[%s248 + $0xe8] sm:$0xff]
        %v317 = vld [vmem:[%s248 + $0xf0] sm:$0xff]
        %v318 = vld [vmem:[%s248 + $0xf8] sm:$0xff]
        %v319 = vld [vmem:[#allocation9] sm:$0xff]
        %v320 = vld [vmem:[#allocation9 + $0x8] sm:$0xff]
        %v321 = vld [vmem:[#allocation9 + $0x10] sm:$0xff]
        %v322 = vld [vmem:[#allocation9 + $0x18] sm:$0xff]
        %v323 = vld [vmem:[#allocation9 + $0x20] sm:$0xff]
        %v324 = vld [vmem:[#allocation9 + $0x28] sm:$0xff]
        %v325 = vld [vmem:[#allocation9 + $0x30] sm:$0xff]
        %v326 = vld [vmem:[#allocation9 + $0x38] sm:$0xff]
        %v327 = vld [vmem:[#allocation9 + $0x40] sm:$0xff]
        %v328 = vld [vmem:[#allocation9 + $0x48] sm:$0xff]
        %v329 = vld [vmem:[#allocation9 + $0x50] sm:$0xff]
        %v330 = vld [vmem:[#allocation9 + $0x58] sm:$0xff]
        %v331 = vld [vmem:[#allocation9 + $0x60] sm:$0xff]
        %v332 = vld [vmem:[#allocation9 + $0x68] sm:$0xff]
        %v333 = vld [vmem:[#allocation9 + $0x70] sm:$0xff]
        %v334 = vld [vmem:[#allocation9 + $0x78] sm:$0xff]
        %v335 = vld [vmem:[#allocation6] sm:$0xff]
        %v336 = vld [vmem:[#allocation6 + $0x30] sm:$0xff]
        %v337 = vld [vmem:[#allocation6 + $0x60] sm:$0xff]
        %v338 = vld [vmem:[#allocation6 + $0x90] sm:$0xff]
        %v339 = vld [vmem:[#allocation6 + $0xc0] sm:$0xff]
        %v340 = vld [vmem:[#allocation6 + $0xf0] sm:$0xff]
        %v341 = vld [vmem:[#allocation6 + $0x120] sm:$0xff]
        %v342 = vld [vmem:[#allocation6 + $0x150] sm:$0xff]
        %v343 = vld [vmem:[#allocation6 + $0x180] sm:$0xff]
        %v344 = vld [vmem:[#allocation6 + $0x1b0] sm:$0xff]
        %v345 = vld [vmem:[#allocation6 + $0x1e0] sm:$0xff]
        %v346 = vld [vmem:[#allocation6 + $0x210] sm:$0xff]
        %v347 = vld [vmem:[#allocation6 + $0x240] sm:$0xff]
        %v348 = vld [vmem:[#allocation6 + $0x270] sm:$0xff]
        %v349 = vld [vmem:[#allocation6 + $0x2a0] sm:$0xff]
        %v350 = vld [vmem:[#allocation6 + $0x2d0] sm:$0xff]
        %v351 = vld [vmem:[#allocation6 + $0x300] sm:$0xff]
        %v352 = vld [vmem:[#allocation6 + $0x330] sm:$0xff]
        %v353 = vld [vmem:[#allocation6 + $0x360] sm:$0xff]
        %v354 = vld [vmem:[#allocation6 + $0x390] sm:$0xff]
        %v355 = vld [vmem:[#allocation6 + $0x3c0] sm:$0xff]
        %v356 = vld [vmem:[#allocation6 + $0x3f0] sm:$0xff]
        %v357 = vld [vmem:[#allocation6 + $0x420] sm:$0xff]
        %v358 = vld [vmem:[#allocation6 + $0x450] sm:$0xff]
        %v359 = vld [vmem:[#allocation6 + $0x480] sm:$0xff]
        %v360 = vld [vmem:[#allocation6 + $0x4b0] sm:$0xff]
        %v361 = vld [vmem:[#allocation6 + $0x4e0] sm:$0xff]
        %v362 = vld [vmem:[#allocation6 + $0x510] sm:$0xff]
        %v363 = vld [vmem:[#allocation6 + $0x540] sm:$0xff]
        %v364 = vld [vmem:[#allocation6 + $0x570] sm:$0xff]
        %v365 = vld [vmem:[#allocation6 + $0x5a0] sm:$0xff]
        %v366 = vld [vmem:[#allocation6 + $0x5d0] sm:$0xff]
        %v367 = vld [vmem:[#allocation6 + $0x10] sm:$0xff]
        %v368 = vld [vmem:[#allocation6 + $0x40] sm:$0xff]
        %v369 = vld [vmem:[#allocation6 + $0x70] sm:$0xff]
        %v370 = vld [vmem:[#allocation6 + $0xa0] sm:$0xff]
        %v371 = vld [vmem:[#allocation6 + $0xd0] sm:$0xff]
        %v372 = vld [vmem:[#allocation6 + $0x100] sm:$0xff]
        %v373 = vld [vmem:[#allocation6 + $0x130] sm:$0xff]
        %v374 = vld [vmem:[#allocation6 + $0x160] sm:$0xff]
        %v375 = vld [vmem:[#allocation6 + $0x190] sm:$0xff]
        %v376 = vld [vmem:[#allocation6 + $0x1c0] sm:$0xff]
        %v377 = vld [vmem:[#allocation6 + $0x1f0] sm:$0xff]
        %v378 = vld [vmem:[#allocation6 + $0x220] sm:$0xff]
        %v379 = vld [vmem:[#allocation6 + $0x250] sm:$0xff]
        %v380 = vld [vmem:[#allocation6 + $0x280] sm:$0xff]
        %v381 = vld [vmem:[#allocation6 + $0x2b0] sm:$0xff]
        %v382 = vld [vmem:[#allocation6 + $0x2e0] sm:$0xff]
        %v383 = vld [vmem:[#allocation6 + $0x310] sm:$0xff]
        %v384 = vld [vmem:[#allocation6 + $0x340] sm:$0xff]
        %v385 = vld [vmem:[#allocation6 + $0x370] sm:$0xff]
        %v386 = vld [vmem:[#allocation6 + $0x3a0] sm:$0xff]
        %v387 = vld [vmem:[#allocation6 + $0x3d0] sm:$0xff]
        %v388 = vld [vmem:[#allocation6 + $0x400] sm:$0xff]
        %v389 = vld [vmem:[#allocation6 + $0x430] sm:$0xff]
        %v390 = vld [vmem:[#allocation6 + $0x460] sm:$0xff]
        %v391 = vld [vmem:[#allocation6 + $0x490] sm:$0xff]
        %v392 = vld [vmem:[#allocation6 + $0x4c0] sm:$0xff]
        %v393 = vld [vmem:[#allocation6 + $0x4f0] sm:$0xff]
        %v394 = vld [vmem:[#allocation6 + $0x520] sm:$0xff]
        %v395 = vld [vmem:[#allocation6 + $0x550] sm:$0xff]
        %v396 = vld [vmem:[#allocation6 + $0x580] sm:$0xff]
        %v397 = vld [vmem:[#allocation6 + $0x5b0] sm:$0xff]
        %v398 = vld [vmem:[#allocation6 + $0x5e0] sm:$0xff]
        %v399 = vld [vmem:[#allocation6 + $0x20] sm:$0xff]
        %v400 = vld [vmem:[#allocation6 + $0x50] sm:$0xff]
        %v401 = vld [vmem:[#allocation6 + $0x80] sm:$0xff]
        %v402 = vld [vmem:[#allocation6 + $0xb0] sm:$0xff]
        %v403 = vld [vmem:[#allocation6 + $0xe0] sm:$0xff]
        %v404 = vld [vmem:[#allocation6 + $0x110] sm:$0xff]
        %v405 = vld [vmem:[#allocation6 + $0x140] sm:$0xff]
        %v406 = vld [vmem:[#allocation6 + $0x170] sm:$0xff]
        %v407 = vld [vmem:[#allocation6 + $0x1a0] sm:$0xff]
        %v408 = vld [vmem:[#allocation6 + $0x1d0] sm:$0xff]
        %v409 = vld [vmem:[#allocation6 + $0x200] sm:$0xff]
        %v410 = vld [vmem:[#allocation6 + $0x230] sm:$0xff]
        %v411 = vld [vmem:[#allocation6 + $0x260] sm:$0xff]
        %v412 = vld [vmem:[#allocation6 + $0x290] sm:$0xff]
        %v413 = vld [vmem:[#allocation6 + $0x2c0] sm:$0xff]
        %v414 = vld [vmem:[#allocation6 + $0x2f0] sm:$0xff]
        %v415 = vld [vmem:[#allocation6 + $0x320] sm:$0xff]
        %v416 = vld [vmem:[#allocation6 + $0x350] sm:$0xff]
        %v417 = vld [vmem:[#allocation6 + $0x380] sm:$0xff]
        %v418 = vld [vmem:[#allocation6 + $0x3b0] sm:$0xff]
        %v419 = vld [vmem:[#allocation6 + $0x3e0] sm:$0xff]
        %v420 = vld [vmem:[#allocation6 + $0x410] sm:$0xff]
        %v421 = vld [vmem:[#allocation6 + $0x440] sm:$0xff]
        %v422 = vld [vmem:[#allocation6 + $0x470] sm:$0xff]
        %v423 = vld [vmem:[#allocation6 + $0x4a0] sm:$0xff]
        %v424 = vld [vmem:[#allocation6 + $0x4d0] sm:$0xff]
        %v425 = vld [vmem:[#allocation6 + $0x500] sm:$0xff]
        %v426 = vld [vmem:[#allocation6 + $0x530] sm:$0xff]
        %v427 = vld [vmem:[#allocation6 + $0x560] sm:$0xff]
        %v428 = vld [vmem:[#allocation6 + $0x590] sm:$0xff]
        %v429 = vld [vmem:[#allocation6 + $0x5c0] sm:$0xff]
        %v430 = vld [vmem:[#allocation6 + $0x5f0] sm:$0xff]
        %431 = vmatprep.subr.mxu0 0.0
        %432 = vmatpush1.msra.mxu0 %v350
        %433 = vmatprep.subr.mxu0 0.0
        %434 = vmatpush1.msra.mxu0 %v349
        %435 = vmatprep.subr.mxu0 0.0
        %436 = vmatpush1.msra.mxu0 %v348
        %437 = vmatprep.subr.mxu0 0.0
        %438 = vmatpush1.msra.mxu0 %v347
        %439 = vmatprep.subr.mxu0 0.0
        %440 = vmatpush1.msra.mxu0 %v346
        %441 = vmatprep.subr.mxu0 0.0
        %442 = vmatpush1.msra.mxu0 %v345
        %443 = vmatprep.subr.mxu0 0.0
        %444 = vmatpush1.msra.mxu0 %v344
        %445 = vmatprep.subr.mxu0 0.0
        %446 = vmatpush1.msra.mxu0 %v343
        %447 = vmatprep.subr.mxu0 0.0
        %448 = vmatpush1.msra.mxu0 %v342
        %449 = vmatprep.subr.mxu0 0.0
        %450 = vmatpush1.msra.mxu0 %v341
        %451 = vmatprep.subr.mxu0 0.0
        %452 = vmatpush1.msra.mxu0 %v340
        %453 = vmatprep.subr.mxu0 0.0
        %454 = vmatpush1.msra.mxu0 %v339
        %455 = vmatprep.subr.mxu0 0.0
        %456 = vmatpush1.msra.mxu0 %v338
        %457 = vmatprep.subr.mxu0 0.0
        %458 = vmatpush1.msra.mxu0 %v337
        %459 = vmatprep.subr.mxu0 0.0
        %460 = vmatpush1.msra.mxu0 %v336
        %461 = vmatprep.subr.mxu0 0.0
        %462 = vmatpush1.msra.mxu0 %v335
        %463 = vmatprep.subr.mxu0 0.0
        %464 = vmatpush2.msra.mxu0 %v366
        %465 = vmatprep.subr.mxu0 0.0
        %466 = vmatpush2.msra.mxu0 %v365
        %467 = vmatprep.subr.mxu0 0.0
        %468 = vmatpush2.msra.mxu0 %v364
        %469 = vmatprep.subr.mxu0 0.0
        %470 = vmatpush2.msra.mxu0 %v363
        %471 = vmatprep.subr.mxu0 0.0
        %472 = vmatpush2.msra.mxu0 %v362
        %473 = vmatprep.subr.mxu0 0.0
        %474 = vmatpush2.msra.mxu0 %v361
        %475 = vmatprep.subr.mxu0 0.0
        %476 = vmatpush2.msra.mxu0 %v360
        %477 = vmatprep.subr.mxu0 0.0
        %478 = vmatpush2.msra.mxu0 %v359
        %479 = vmatprep.subr.mxu0 0.0
        %480 = vmatpush2.msra.mxu0 %v358
        %481 = vmatprep.subr.mxu0 0.0
        %482 = vmatpush2.msra.mxu0 %v357
        %483 = vmatprep.subr.mxu0 0.0
        %484 = vmatpush2.msra.mxu0 %v356
        %485 = vmatprep.subr.mxu0 0.0
        %486 = vmatpush2.msra.mxu0 %v355
        %487 = vmatprep.subr.mxu0 0.0
        %488 = vmatpush2.msra.mxu0 %v354
        %489 = vmatprep.subr.mxu0 0.0
        %490 = vmatpush2.msra.mxu0 %v353
        %491 = vmatprep.subr.mxu0 0.0
        %492 = vmatpush2.msra.mxu0 %v352
        %493 = vmatprep.subr.mxu0 0.0
        %494 = vmatpush2.msra.mxu0 %v351
        %495 = vmatprep.mubr.f32.mxu0 %v288
        %496 = vmatmul.mubr.f32.gmra.mxu0 %v287
        %v497 = vpop.f32.mrf.mxu0
        %v498 = vadd.f32 0.0, %v497
        %v499 = vpop.f32.mrf.mxu0
        %500 = vmatprep.mubr.f32.mxu0 %v290
        %501 = vmatmul.mubr.f32.gmra.mxu0 %v289
        %v502 = vpop.f32.mrf.mxu0
        %v503 = vadd.f32 0.0, %v502
        %v504 = vpop.f32.mrf.mxu0
        %505 = vmatprep.mubr.f32.mxu0 %v292
        %506 = vmatmul.mubr.f32.gmra.mxu0 %v291
        %v507 = vpop.f32.mrf.mxu0
        %v508 = vadd.f32 0.0, %v507
        %v509 = vpop.f32.mrf.mxu0
        %510 = vmatprep.mubr.f32.mxu0 %v294
        %511 = vmatmul.mubr.f32.gmra.mxu0 %v293
        %v512 = vpop.f32.mrf.mxu0
        %v513 = vadd.f32 0.0, %v512
        %v514 = vpop.f32.mrf.mxu0
        %515 = vmatprep.mubr.f32.mxu0 %v296
        %516 = vmatmul.mubr.f32.gmra.mxu0 %v295
        %v517 = vpop.f32.mrf.mxu0
        %v518 = vadd.f32 0.0, %v517
        %v519 = vpop.f32.mrf.mxu0
        %520 = vmatprep.mubr.f32.mxu0 %v298
        %521 = vmatmul.mubr.f32.gmra.mxu0 %v297
        %v522 = vpop.f32.mrf.mxu0
        %v523 = vadd.f32 0.0, %v522
        %v524 = vpop.f32.mrf.mxu0
        %525 = vmatprep.mubr.f32.mxu0 %v300
        %526 = vmatmul.mubr.f32.gmra.mxu0 %v299
        %v527 = vpop.f32.mrf.mxu0
        %v528 = vadd.f32 0.0, %v527
        %v529 = vpop.f32.mrf.mxu0
        %530 = vmatprep.mubr.f32.mxu0 %v302
        %531 = vmatmul.mubr.f32.gmra.mxu0 %v301
        %v532 = vpop.f32.mrf.mxu0
        %v533 = vadd.f32 0.0, %v532
        %v534 = vpop.f32.mrf.mxu0
        %535 = vmatprep.mubr.f32.mxu0 %v304
        %536 = vmatmul.mubr.f32.gmra.mxu0 %v303
        %v537 = vpop.f32.mrf.mxu0
        %v538 = vadd.f32 0.0, %v537
        %v539 = vpop.f32.mrf.mxu0
        %540 = vmatprep.mubr.f32.mxu0 %v306
        %541 = vmatmul.mubr.f32.gmra.mxu0 %v305
        %v542 = vpop.f32.mrf.mxu0
        %v543 = vadd.f32 0.0, %v542
        %v544 = vpop.f32.mrf.mxu0
        %545 = vmatprep.mubr.f32.mxu0 %v308
        %546 = vmatmul.mubr.f32.gmra.mxu0 %v307
        %v547 = vpop.f32.mrf.mxu0
        %v548 = vadd.f32 0.0, %v547
        %v549 = vpop.f32.mrf.mxu0
        %550 = vmatprep.mubr.f32.mxu0 %v310
        %551 = vmatmul.mubr.f32.gmra.mxu0 %v309
        %v552 = vpop.f32.mrf.mxu0
        %v553 = vadd.f32 0.0, %v552
        %v554 = vpop.f32.mrf.mxu0
        %555 = vmatprep.mubr.f32.mxu0 %v312
        %556 = vmatmul.mubr.f32.gmra.mxu0 %v311
        %v557 = vpop.f32.mrf.mxu0
        %v558 = vadd.f32 0.0, %v557
        %v559 = vpop.f32.mrf.mxu0
        %560 = vmatprep.mubr.f32.mxu0 %v314
        %561 = vmatmul.mubr.f32.gmra.mxu0 %v313
        %v562 = vpop.f32.mrf.mxu0
        %v563 = vadd.f32 0.0, %v562
        %v564 = vpop.f32.mrf.mxu0
        %565 = vmatprep.mubr.f32.mxu0 %v316
        %566 = vmatmul.mubr.f32.gmra.mxu0 %v315
        %v567 = vpop.f32.mrf.mxu0
        %v568 = vadd.f32 0.0, %v567
        %v569 = vpop.f32.mrf.mxu0
        %570 = vmatprep.mubr.f32.mxu0 %v318
        %571 = vmatmul.mubr.f32.gmra.mxu0 %v317
        %v572 = vpop.f32.mrf.mxu0
        %v573 = vadd.f32 0.0, %v572
        %v574 = vpop.f32.mrf.mxu0
        %575 = vdwg.mxu0
        %576 = vmatprep.subr.mxu0 0.0
        %577 = vmatpush1.msra.mxu0 %v382
        %578 = vmatprep.subr.mxu0 0.0
        %579 = vmatpush1.msra.mxu0 %v381
        %580 = vmatprep.subr.mxu0 0.0
        %581 = vmatpush1.msra.mxu0 %v380
        %582 = vmatprep.subr.mxu0 0.0
        %583 = vmatpush1.msra.mxu0 %v379
        %584 = vmatprep.subr.mxu0 0.0
        %585 = vmatpush1.msra.mxu0 %v378
        %586 = vmatprep.subr.mxu0 0.0
        %587 = vmatpush1.msra.mxu0 %v377
        %588 = vmatprep.subr.mxu0 0.0
        %589 = vmatpush1.msra.mxu0 %v376
        %590 = vmatprep.subr.mxu0 0.0
        %591 = vmatpush1.msra.mxu0 %v375
        %592 = vmatprep.subr.mxu0 0.0
        %593 = vmatpush1.msra.mxu0 %v374
        %594 = vmatprep.subr.mxu0 0.0
        %595 = vmatpush1.msra.mxu0 %v373
        %596 = vmatprep.subr.mxu0 0.0
        %597 = vmatpush1.msra.mxu0 %v372
        %598 = vmatprep.subr.mxu0 0.0
        %599 = vmatpush1.msra.mxu0 %v371
        %600 = vmatprep.subr.mxu0 0.0
        %601 = vmatpush1.msra.mxu0 %v370
        %602 = vmatprep.subr.mxu0 0.0
        %603 = vmatpush1.msra.mxu0 %v369
        %604 = vmatprep.subr.mxu0 0.0
        %605 = vmatpush1.msra.mxu0 %v368
        %606 = vmatprep.subr.mxu0 0.0
        %607 = vmatpush1.msra.mxu0 %v367
        %608 = vmatprep.subr.mxu0 0.0
        %609 = vmatpush2.msra.mxu0 %v398
        %610 = vmatprep.subr.mxu0 0.0
        %611 = vmatpush2.msra.mxu0 %v397
        %612 = vmatprep.subr.mxu0 0.0
        %613 = vmatpush2.msra.mxu0 %v396
        %614 = vmatprep.subr.mxu0 0.0
        %615 = vmatpush2.msra.mxu0 %v395
        %616 = vmatprep.subr.mxu0 0.0
        %617 = vmatpush2.msra.mxu0 %v394
        %618 = vmatprep.subr.mxu0 0.0
        %619 = vmatpush2.msra.mxu0 %v393
        %620 = vmatprep.subr.mxu0 0.0
        %621 = vmatpush2.msra.mxu0 %v392
        %622 = vmatprep.subr.mxu0 0.0
        %623 = vmatpush2.msra.mxu0 %v391
        %624 = vmatprep.subr.mxu0 0.0
        %625 = vmatpush2.msra.mxu0 %v390
        %626 = vmatprep.subr.mxu0 0.0
        %627 = vmatpush2.msra.mxu0 %v389
        %628 = vmatprep.subr.mxu0 0.0
        %629 = vmatpush2.msra.mxu0 %v388
        %630 = vmatprep.subr.mxu0 0.0
        %631 = vmatpush2.msra.mxu0 %v387
        %632 = vmatprep.subr.mxu0 0.0
        %633 = vmatpush2.msra.mxu0 %v386
        %634 = vmatprep.subr.mxu0 0.0
        %635 = vmatpush2.msra.mxu0 %v385
        %636 = vmatprep.subr.mxu0 0.0
        %637 = vmatpush2.msra.mxu0 %v384
        %638 = vmatprep.subr.mxu0 0.0
        %639 = vmatpush2.msra.mxu0 %v383
        %640 = vmatprep.mubr.f32.mxu0 %v288
        %641 = vmatmul.mubr.f32.gmra.mxu0 %v287
        %v642 = vpop.f32.mrf.mxu0
        %v643 = vadd.f32 0.0, %v642
        %v644 = vpop.f32.mrf.mxu0
        %645 = vmatprep.mubr.f32.mxu0 %v290
        %646 = vmatmul.mubr.f32.gmra.mxu0 %v289
        %v647 = vpop.f32.mrf.mxu0
        %v648 = vadd.f32 0.0, %v647
        %v649 = vpop.f32.mrf.mxu0
        %650 = vmatprep.mubr.f32.mxu0 %v292
        %651 = vmatmul.mubr.f32.gmra.mxu0 %v291
        %v652 = vpop.f32.mrf.mxu0
        %v653 = vadd.f32 0.0, %v652
        %v654 = vpop.f32.mrf.mxu0
        %655 = vmatprep.mubr.f32.mxu0 %v294
        %656 = vmatmul.mubr.f32.gmra.mxu0 %v293
        %v657 = vpop.f32.mrf.mxu0
        %v658 = vadd.f32 0.0, %v657
        %v659 = vpop.f32.mrf.mxu0
        %660 = vmatprep.mubr.f32.mxu0 %v296
        %661 = vmatmul.mubr.f32.gmra.mxu0 %v295
        %v662 = vpop.f32.mrf.mxu0
        %v663 = vadd.f32 0.0, %v662
        %v664 = vpop.f32.mrf.mxu0
        %665 = vmatprep.mubr.f32.mxu0 %v298
        %666 = vmatmul.mubr.f32.gmra.mxu0 %v297
        %v667 = vpop.f32.mrf.mxu0
        %v668 = vadd.f32 0.0, %v667
        %v669 = vpop.f32.mrf.mxu0
        %670 = vmatprep.mubr.f32.mxu0 %v300
        %671 = vmatmul.mubr.f32.gmra.mxu0 %v299
        %v672 = vpop.f32.mrf.mxu0
        %v673 = vadd.f32 0.0, %v672
        %v674 = vpop.f32.mrf.mxu0
        %675 = vmatprep.mubr.f32.mxu0 %v302
        %676 = vmatmul.mubr.f32.gmra.mxu0 %v301
        %v677 = vpop.f32.mrf.mxu0
        %v678 = vadd.f32 0.0, %v677
        %v679 = vpop.f32.mrf.mxu0
        %680 = vmatprep.mubr.f32.mxu0 %v304
        %681 = vmatmul.mubr.f32.gmra.mxu0 %v303
        %v682 = vpop.f32.mrf.mxu0
        %v683 = vadd.f32 0.0, %v682
        %v684 = vpop.f32.mrf.mxu0
        %685 = vmatprep.mubr.f32.mxu0 %v306
        %686 = vmatmul.mubr.f32.gmra.mxu0 %v305
        %v687 = vpop.f32.mrf.mxu0
        %v688 = vadd.f32 0.0, %v687
        %v689 = vpop.f32.mrf.mxu0
        %690 = vmatprep.mubr.f32.mxu0 %v308
        %691 = vmatmul.mubr.f32.gmra.mxu0 %v307
        %v692 = vpop.f32.mrf.mxu0
        %v693 = vadd.f32 0.0, %v692
        %v694 = vpop.f32.mrf.mxu0
        %695 = vmatprep.mubr.f32.mxu0 %v310
        %696 = vmatmul.mubr.f32.gmra.mxu0 %v309
        %v697 = vpop.f32.mrf.mxu0
        %v698 = vadd.f32 0.0, %v697
        %v699 = vpop.f32.mrf.mxu0
        %700 = vmatprep.mubr.f32.mxu0 %v312
        %701 = vmatmul.mubr.f32.gmra.mxu0 %v311
        %v702 = vpop.f32.mrf.mxu0
        %v703 = vadd.f32 0.0, %v702
        %v704 = vpop.f32.mrf.mxu0
        %705 = vmatprep.mubr.f32.mxu0 %v314
        %706 = vmatmul.mubr.f32.gmra.mxu0 %v313
        %v707 = vpop.f32.mrf.mxu0
        %v708 = vadd.f32 0.0, %v707
        %v709 = vpop.f32.mrf.mxu0
        %710 = vmatprep.mubr.f32.mxu0 %v316
        %711 = vmatmul.mubr.f32.gmra.mxu0 %v315
        %v712 = vpop.f32.mrf.mxu0
        %v713 = vadd.f32 0.0, %v712
        %v714 = vpop.f32.mrf.mxu0
        %715 = vmatprep.mubr.f32.mxu0 %v318
        %716 = vmatmul.mubr.f32.gmra.mxu0 %v317
        %v717 = vpop.f32.mrf.mxu0
        %v718 = vadd.f32 0.0, %v717
        %v719 = vpop.f32.mrf.mxu0
        %720 = vdwg.mxu0
        %721 = vmatprep.subr.mxu0 0.0
        %722 = vmatpush1.msra.mxu0 %v414
        %723 = vmatprep.subr.mxu0 0.0
        %724 = vmatpush1.msra.mxu0 %v413
        %725 = vmatprep.subr.mxu0 0.0
        %726 = vmatpush1.msra.mxu0 %v412
        %727 = vmatprep.subr.mxu0 0.0
        %728 = vmatpush1.msra.mxu0 %v411
        %729 = vmatprep.subr.mxu0 0.0
        %730 = vmatpush1.msra.mxu0 %v410
        %731 = vmatprep.subr.mxu0 0.0
        %732 = vmatpush1.msra.mxu0 %v409
        %733 = vmatprep.subr.mxu0 0.0
        %734 = vmatpush1.msra.mxu0 %v408
        %735 = vmatprep.subr.mxu0 0.0
        %736 = vmatpush1.msra.mxu0 %v407
        %737 = vmatprep.subr.mxu0 0.0
        %738 = vmatpush1.msra.mxu0 %v406
        %739 = vmatprep.subr.mxu0 0.0
        %740 = vmatpush1.msra.mxu0 %v405
        %741 = vmatprep.subr.mxu0 0.0
        %742 = vmatpush1.msra.mxu0 %v404
        %743 = vmatprep.subr.mxu0 0.0
        %744 = vmatpush1.msra.mxu0 %v403
        %745 = vmatprep.subr.mxu0 0.0
        %746 = vmatpush1.msra.mxu0 %v402
        %747 = vmatprep.subr.mxu0 0.0
        %748 = vmatpush1.msra.mxu0 %v401
        %749 = vmatprep.subr.mxu0 0.0
        %750 = vmatpush1.msra.mxu0 %v400
        %751 = vmatprep.subr.mxu0 0.0
        %752 = vmatpush1.msra.mxu0 %v399
        %753 = vmatprep.subr.mxu0 0.0
        %754 = vmatpush2.msra.mxu0 %v430
        %755 = vmatprep.subr.mxu0 0.0
        %756 = vmatpush2.msra.mxu0 %v429
        %757 = vmatprep.subr.mxu0 0.0
        %758 = vmatpush2.msra.mxu0 %v428
        %759 = vmatprep.subr.mxu0 0.0
        %760 = vmatpush2.msra.mxu0 %v427
        %761 = vmatprep.subr.mxu0 0.0
        %762 = vmatpush2.msra.mxu0 %v426
        %763 = vmatprep.subr.mxu0 0.0
        %764 = vmatpush2.msra.mxu0 %v425
        %765 = vmatprep.subr.mxu0 0.0
        %766 = vmatpush2.msra.mxu0 %v424
        %767 = vmatprep.subr.mxu0 0.0
        %768 = vmatpush2.msra.mxu0 %v423
        %769 = vmatprep.subr.mxu0 0.0
        %770 = vmatpush2.msra.mxu0 %v422
        %771 = vmatprep.subr.mxu0 0.0
        %772 = vmatpush2.msra.mxu0 %v421
        %773 = vmatprep.subr.mxu0 0.0
        %774 = vmatpush2.msra.mxu0 %v420
        %775 = vmatprep.subr.mxu0 0.0
        %776 = vmatpush2.msra.mxu0 %v419
        %777 = vmatprep.subr.mxu0 0.0
        %778 = vmatpush2.msra.mxu0 %v418
        %779 = vmatprep.subr.mxu0 0.0
        %780 = vmatpush2.msra.mxu0 %v417
        %781 = vmatprep.subr.mxu0 0.0
        %782 = vmatpush2.msra.mxu0 %v416
        %783 = vmatprep.subr.mxu0 0.0
        %784 = vmatpush2.msra.mxu0 %v415
        %785 = vmatprep.mubr.f32.mxu0 %v288
        %786 = vmatmul.mubr.f32.gmra.mxu0 %v287
        %v787 = vpop.f32.mrf.mxu0
        %v788 = vadd.f32 0.0, %v787
        %v789 = vpop.f32.mrf.mxu0
        %790 = vmatprep.mubr.f32.mxu0 %v290
        %791 = vmatmul.mubr.f32.gmra.mxu0 %v289
        %v792 = vpop.f32.mrf.mxu0
        %v793 = vadd.f32 0.0, %v792
        %v794 = vpop.f32.mrf.mxu0
        %795 = vmatprep.mubr.f32.mxu0 %v292
        %796 = vmatmul.mubr.f32.gmra.mxu0 %v291
        %v797 = vpop.f32.mrf.mxu0
        %v798 = vadd.f32 0.0, %v797
        %v799 = vpop.f32.mrf.mxu0
        %800 = vmatprep.mubr.f32.mxu0 %v294
        %801 = vmatmul.mubr.f32.gmra.mxu0 %v293
        %v802 = vpop.f32.mrf.mxu0
        %v803 = vadd.f32 0.0, %v802
        %v804 = vpop.f32.mrf.mxu0
        %805 = vmatprep.mubr.f32.mxu0 %v296
        %806 = vmatmul.mubr.f32.gmra.mxu0 %v295
        %v807 = vpop.f32.mrf.mxu0
        %v808 = vadd.f32 0.0, %v807
        %v809 = vpop.f32.mrf.mxu0
        %810 = vmatprep.mubr.f32.mxu0 %v298
        %811 = vmatmul.mubr.f32.gmra.mxu0 %v297
        %v812 = vpop.f32.mrf.mxu0
        %v813 = vadd.f32 0.0, %v812
        %v814 = vpop.f32.mrf.mxu0
        %815 = vmatprep.mubr.f32.mxu0 %v300
        %816 = vmatmul.mubr.f32.gmra.mxu0 %v299
        %v817 = vpop.f32.mrf.mxu0
        %v818 = vadd.f32 0.0, %v817
        %v819 = vpop.f32.mrf.mxu0
        %820 = vmatprep.mubr.f32.mxu0 %v302
        %821 = vmatmul.mubr.f32.gmra.mxu0 %v301
        %v822 = vpop.f32.mrf.mxu0
        %v823 = vadd.f32 0.0, %v822
        %v824 = vpop.f32.mrf.mxu0
        %825 = vmatprep.mubr.f32.mxu0 %v304
        %826 = vmatmul.mubr.f32.gmra.mxu0 %v303
        %v827 = vpop.f32.mrf.mxu0
        %v828 = vadd.f32 0.0, %v827
        %v829 = vpop.f32.mrf.mxu0
        %830 = vmatprep.mubr.f32.mxu0 %v306
        %831 = vmatmul.mubr.f32.gmra.mxu0 %v305
        %v832 = vpop.f32.mrf.mxu0
        %v833 = vadd.f32 0.0, %v832
        %v834 = vpop.f32.mrf.mxu0
        %835 = vmatprep.mubr.f32.mxu0 %v308
        %836 = vmatmul.mubr.f32.gmra.mxu0 %v307
        %v837 = vpop.f32.mrf.mxu0
        %v838 = vadd.f32 0.0, %v837
        %v839 = vpop.f32.mrf.mxu0
        %840 = vmatprep.mubr.f32.mxu0 %v310
        %841 = vmatmul.mubr.f32.gmra.mxu0 %v309
        %v842 = vpop.f32.mrf.mxu0
        %v843 = vadd.f32 0.0, %v842
        %v844 = vpop.f32.mrf.mxu0
        %845 = vmatprep.mubr.f32.mxu0 %v312
        %846 = vmatmul.mubr.f32.gmra.mxu0 %v311
        %v847 = vpop.f32.mrf.mxu0
        %v848 = vadd.f32 0.0, %v847
        %v849 = vpop.f32.mrf.mxu0
        %850 = vmatprep.mubr.f32.mxu0 %v314
        %851 = vmatmul.mubr.f32.gmra.mxu0 %v313
        %v852 = vpop.f32.mrf.mxu0
        %v853 = vadd.f32 0.0, %v852
        %v854 = vpop.f32.mrf.mxu0
        %855 = vmatprep.mubr.f32.mxu0 %v316
        %856 = vmatmul.mubr.f32.gmra.mxu0 %v315
        %v857 = vpop.f32.mrf.mxu0
        %v858 = vadd.f32 0.0, %v857
        %v859 = vpop.f32.mrf.mxu0
        %860 = vmatprep.mubr.f32.mxu0 %v318
        %861 = vmatmul.mubr.f32.gmra.mxu0 %v317
        %v862 = vpop.f32.mrf.mxu0
        %v863 = vadd.f32 0.0, %v862
        %v864 = vpop.f32.mrf.mxu0
        %865 = vdwg.mxu0
        %866 = vmatprep.subr.mxu0 0.0
        %867 = vmatpush1.xpose.msra.mxu0 %v718
        %868 = vmatprep.subr.mxu0 0.0
        %869 = vmatpush1.xpose.msra.mxu0 %v713
        %870 = vmatprep.subr.mxu0 0.0
        %871 = vmatpush1.xpose.msra.mxu0 %v708
        %872 = vmatprep.subr.mxu0 0.0
        %873 = vmatpush1.xpose.msra.mxu0 %v703
        %874 = vmatprep.subr.mxu0 0.0
        %875 = vmatpush1.xpose.msra.mxu0 %v698
        %876 = vmatprep.subr.mxu0 0.0
        %877 = vmatpush1.xpose.msra.mxu0 %v693
        %878 = vmatprep.subr.mxu0 0.0
        %879 = vmatpush1.xpose.msra.mxu0 %v688
        %880 = vmatprep.subr.mxu0 0.0
        %881 = vmatpush1.xpose.msra.mxu0 %v683
        %882 = vmatprep.subr.mxu0 0.0
        %883 = vmatpush1.xpose.msra.mxu0 %v678
        %884 = vmatprep.subr.mxu0 0.0
        %885 = vmatpush1.xpose.msra.mxu0 %v673
        %886 = vmatprep.subr.mxu0 0.0
        %887 = vmatpush1.xpose.msra.mxu0 %v668
        %888 = vmatprep.subr.mxu0 0.0
        %889 = vmatpush1.xpose.msra.mxu0 %v663
        %890 = vmatprep.subr.mxu0 0.0
        %891 = vmatpush1.xpose.msra.mxu0 %v658
        %892 = vmatprep.subr.mxu0 0.0
        %893 = vmatpush1.xpose.msra.mxu0 %v653
        %894 = vmatprep.subr.mxu0 0.0
        %895 = vmatpush1.xpose.msra.mxu0 %v648
        %896 = vmatprep.subr.mxu0 0.0
        %897 = vmatpush1.xpose.msra.mxu0 %v643
        %898 = vmatprep.subr.mxu0 0.0
        %899 = vmatpush2.xpose.msra.mxu0 0.0
        %900 = vmatprep.subr.mxu0 0.0
        %901 = vmatpush2.xpose.msra.mxu0 0.0
        %902 = vmatprep.subr.mxu0 0.0
        %903 = vmatpush2.xpose.msra.mxu0 0.0
        %904 = vmatprep.subr.mxu0 0.0
        %905 = vmatpush2.xpose.msra.mxu0 0.0
        %906 = vmatprep.subr.mxu0 0.0
        %907 = vmatpush2.xpose.msra.mxu0 0.0
        %908 = vmatprep.subr.mxu0 0.0
        %909 = vmatpush2.xpose.msra.mxu0 0.0
        %910 = vmatprep.subr.mxu0 0.0
        %911 = vmatpush2.xpose.msra.mxu0 0.0
        %912 = vmatprep.subr.mxu0 0.0
        %913 = vmatpush2.xpose.msra.mxu0 0.0
        %914 = vmatprep.subr.mxu0 0.0
        %915 = vmatpush2.xpose.msra.mxu0 0.0
        %916 = vmatprep.subr.mxu0 0.0
        %917 = vmatpush2.xpose.msra.mxu0 0.0
        %918 = vmatprep.subr.mxu0 0.0
        %919 = vmatpush2.xpose.msra.mxu0 0.0
        %920 = vmatprep.subr.mxu0 0.0
        %921 = vmatpush2.xpose.msra.mxu0 0.0
        %922 = vmatprep.subr.mxu0 0.0
        %923 = vmatpush2.xpose.msra.mxu0 0.0
        %924 = vmatprep.subr.mxu0 0.0
        %925 = vmatpush2.xpose.msra.mxu0 0.0
        %926 = vmatprep.subr.mxu0 0.0
        %927 = vmatpush2.xpose.msra.mxu0 0.0
        %928 = vmatprep.subr.mxu0 0.0
        %929 = vmatpush2.xpose.msra.mxu0 0.0
        %930 = vmatprep.mubr.f32.mxu0 0.0
        %931 = vmatmul.mubr.f32.gmra.mxu0 %v498
        %v932 = vpop.f32.mrf.mxu0
        %v933 = vadd.f32 0.0, %v932
        %v934 = vpop.f32.mrf.mxu0
        %935 = vmatprep.mubr.f32.mxu0 0.0
        %936 = vmatmul.mubr.f32.gmra.mxu0 %v503
        %v937 = vpop.f32.mrf.mxu0
        %v938 = vadd.f32 0.0, %v937
        %v939 = vpop.f32.mrf.mxu0
        %940 = vmatprep.mubr.f32.mxu0 0.0
        %941 = vmatmul.mubr.f32.gmra.mxu0 %v508
        %v942 = vpop.f32.mrf.mxu0
        %v943 = vadd.f32 0.0, %v942
        %v944 = vpop.f32.mrf.mxu0
        %945 = vmatprep.mubr.f32.mxu0 0.0
        %946 = vmatmul.mubr.f32.gmra.mxu0 %v513
        %v947 = vpop.f32.mrf.mxu0
        %v948 = vadd.f32 0.0, %v947
        %v949 = vpop.f32.mrf.mxu0
        %950 = vmatprep.mubr.f32.mxu0 0.0
        %951 = vmatmul.mubr.f32.gmra.mxu0 %v518
        %v952 = vpop.f32.mrf.mxu0
        %v953 = vadd.f32 0.0, %v952
        %v954 = vpop.f32.mrf.mxu0
        %955 = vmatprep.mubr.f32.mxu0 0.0
        %956 = vmatmul.mubr.f32.gmra.mxu0 %v523
        %v957 = vpop.f32.mrf.mxu0
        %v958 = vadd.f32 0.0, %v957
        %v959 = vpop.f32.mrf.mxu0
        %960 = vmatprep.mubr.f32.mxu0 0.0
        %961 = vmatmul.mubr.f32.gmra.mxu0 %v528
        %v962 = vpop.f32.mrf.mxu0
        %v963 = vadd.f32 0.0, %v962
        %v964 = vpop.f32.mrf.mxu0
        %965 = vmatprep.mubr.f32.mxu0 0.0
        %966 = vmatmul.mubr.f32.gmra.mxu0 %v533
        %v967 = vpop.f32.mrf.mxu0
        %v968 = vadd.f32 0.0, %v967
        %v969 = vpop.f32.mrf.mxu0
        %970 = vmatprep.mubr.f32.mxu0 0.0
        %971 = vmatmul.mubr.f32.gmra.mxu0 %v538
        %v972 = vpop.f32.mrf.mxu0
        %v973 = vadd.f32 0.0, %v972
        %v974 = vpop.f32.mrf.mxu0
        %975 = vmatprep.mubr.f32.mxu0 0.0
        %976 = vmatmul.mubr.f32.gmra.mxu0 %v543
        %v977 = vpop.f32.mrf.mxu0
        %v978 = vadd.f32 0.0, %v977
        %v979 = vpop.f32.mrf.mxu0
        %980 = vmatprep.mubr.f32.mxu0 0.0
        %981 = vmatmul.mubr.f32.gmra.mxu0 %v548
        %v982 = vpop.f32.mrf.mxu0
        %v983 = vadd.f32 0.0, %v982
        %v984 = vpop.f32.mrf.mxu0
        %985 = vmatprep.mubr.f32.mxu0 0.0
        %986 = vmatmul.mubr.f32.gmra.mxu0 %v553
        %v987 = vpop.f32.mrf.mxu0
        %v988 = vadd.f32 0.0, %v987
        %v989 = vpop.f32.mrf.mxu0
        %990 = vmatprep.mubr.f32.mxu0 0.0
        %991 = vmatmul.mubr.f32.gmra.mxu0 %v558
        %v992 = vpop.f32.mrf.mxu0
        %v993 = vadd.f32 0.0, %v992
        %v994 = vpop.f32.mrf.mxu0
        %995 = vmatprep.mubr.f32.mxu0 0.0
        %996 = vmatmul.mubr.f32.gmra.mxu0 %v563
        %v997 = vpop.f32.mrf.mxu0
        %v998 = vadd.f32 0.0, %v997
        %v999 = vpop.f32.mrf.mxu0
        %1000 = vmatprep.mubr.f32.mxu0 0.0
        %1001 = vmatmul.mubr.f32.gmra.mxu0 %v568
        %v1002 = vpop.f32.mrf.mxu0
        %v1003 = vadd.f32 0.0, %v1002
        %v1004 = vpop.f32.mrf.mxu0
        %1005 = vmatprep.mubr.f32.mxu0 0.0
        %1006 = vmatmul.mubr.f32.gmra.mxu0 %v573
        %v1007 = vpop.f32.mrf.mxu0
        %v1008 = vadd.f32 0.0, %v1007
        %v1009 = vpop.f32.mrf.mxu0
        %1010 = vdwg.mxu0
        %v1011 = vmul.f32 %v933, 0.088388346
        %v1012 = vmul.f32 %v938, 0.088388346
        %v1013 = vmul.f32 %v943, 0.088388346
        %v1014 = vmul.f32 %v948, 0.088388346
        %v1015 = vmul.f32 %v953, 0.088388346
        %v1016 = vmul.f32 %v958, 0.088388346
        %v1017 = vmul.f32 %v963, 0.088388346
        %v1018 = vmul.f32 %v968, 0.088388346
        %v1019 = vmul.f32 %v973, 0.088388346
        %v1020 = vmul.f32 %v978, 0.088388346
        %v1021 = vmul.f32 %v983, 0.088388346
        %v1022 = vmul.f32 %v988, 0.088388346
        %v1023 = vmul.f32 %v993, 0.088388346
        %v1024 = vmul.f32 %v998, 0.088388346
        %v1025 = vmul.f32 %v1003, 0.088388346
        %v1026 = vmul.f32 %v1008, 0.088388346
        %v1027 = vadd.f32 %v1011, %v319
        %v1028 = vadd.f32 %v1012, %v320
        %v1029 = vadd.f32 %v1013, %v321
        %v1030 = vadd.f32 %v1014, %v322
        %v1031 = vadd.f32 %v1015, %v323
        %v1032 = vadd.f32 %v1016, %v324
        %v1033 = vadd.f32 %v1017, %v325
        %v1034 = vadd.f32 %v1018, %v326
        %v1035 = vadd.f32 %v1019, %v327
        %v1036 = vadd.f32 %v1020, %v328
        %v1037 = vadd.f32 %v1021, %v329
        %v1038 = vadd.f32 %v1022, %v330
        %v1039 = vadd.f32 %v1023, %v331
        %v1040 = vadd.f32 %v1024, %v332
        %v1041 = vadd.f32 %v1025, %v333
        %v1042 = vadd.f32 %v1026, %v334
        %1043 = vmax.xlane.f32.xlu0 %v1027
        %v1044 = vpop.xlane.xlu0 %1043
        %1045 = vmax.xlane.f32.xlu0 %v1028
        %v1046 = vpop.xlane.xlu0 %1045
        %1047 = vmax.xlane.f32.xlu0 %v1029
        %v1048 = vpop.xlane.xlu0 %1047
        %1049 = vmax.xlane.f32.xlu0 %v1030
        %v1050 = vpop.xlane.xlu0 %1049
        %1051 = vmax.xlane.f32.xlu0 %v1031
        %v1052 = vpop.xlane.xlu0 %1051
        %1053 = vmax.xlane.f32.xlu0 %v1032
        %v1054 = vpop.xlane.xlu0 %1053
        %1055 = vmax.xlane.f32.xlu0 %v1033
        %v1056 = vpop.xlane.xlu0 %1055
        %1057 = vmax.xlane.f32.xlu0 %v1034
        %v1058 = vpop.xlane.xlu0 %1057
        %1059 = vmax.xlane.f32.xlu0 %v1035
        %v1060 = vpop.xlane.xlu0 %1059
        %1061 = vmax.xlane.f32.xlu0 %v1036
        %v1062 = vpop.xlane.xlu0 %1061
        %1063 = vmax.xlane.f32.xlu0 %v1037
        %v1064 = vpop.xlane.xlu0 %1063
        %1065 = vmax.xlane.f32.xlu0 %v1038
        %v1066 = vpop.xlane.xlu0 %1065
        %1067 = vmax.xlane.f32.xlu0 %v1039
        %v1068 = vpop.xlane.xlu0 %1067
        %1069 = vmax.xlane.f32.xlu0 %v1040
        %v1070 = vpop.xlane.xlu0 %1069
        %1071 = vmax.xlane.f32.xlu0 %v1041
        %v1072 = vpop.xlane.xlu0 %1071
        %1073 = vmax.xlane.f32.xlu0 %v1042
        %v1074 = vpop.xlane.xlu0 %1073
        %v1075 = vsub.f32 %v1027, %v1044
        %v1076 = vsub.f32 %v1028, %v1046
        %v1077 = vsub.f32 %v1029, %v1048
        %v1078 = vsub.f32 %v1030, %v1050
        %v1079 = vsub.f32 %v1031, %v1052
        %v1080 = vsub.f32 %v1032, %v1054
        %v1081 = vsub.f32 %v1033, %v1056
        %v1082 = vsub.f32 %v1034, %v1058
        %v1083 = vsub.f32 %v1035, %v1060
        %v1084 = vsub.f32 %v1036, %v1062
        %v1085 = vsub.f32 %v1037, %v1064
        %v1086 = vsub.f32 %v1038, %v1066
        %v1087 = vsub.f32 %v1039, %v1068
        %v1088 = vsub.f32 %v1040, %v1070
        %v1089 = vsub.f32 %v1041, %v1072
        %v1090 = vsub.f32 %v1042, %v1074
        %v1091 = vmul.f32 %v1075, 1.442695
        %v1092 = vpow.pop %v1091
        %v1093 = vmul.f32 %v1076, 1.442695
        %v1094 = vpow.pop %v1093
        %v1095 = vmul.f32 %v1077, 1.442695
        %v1096 = vpow.pop %v1095
        %v1097 = vmul.f32 %v1078, 1.442695
        %v1098 = vpow.pop %v1097
        %v1099 = vmul.f32 %v1079, 1.442695
        %v1100 = vpow.pop %v1099
        %v1101 = vmul.f32 %v1080, 1.442695
        %v1102 = vpow.pop %v1101
        %v1103 = vmul.f32 %v1081, 1.442695
        %v1104 = vpow.pop %v1103
        %v1105 = vmul.f32 %v1082, 1.442695
        %v1106 = vpow.pop %v1105
        %v1107 = vmul.f32 %v1083, 1.442695
        %v1108 = vpow.pop %v1107
        %v1109 = vmul.f32 %v1084, 1.442695
        %v1110 = vpow.pop %v1109
        %v1111 = vmul.f32 %v1085, 1.442695
        %v1112 = vpow.pop %v1111
        %v1113 = vmul.f32 %v1086, 1.442695
        %v1114 = vpow.pop %v1113
        %v1115 = vmul.f32 %v1087, 1.442695
        %v1116 = vpow.pop %v1115
        %v1117 = vmul.f32 %v1088, 1.442695
        %v1118 = vpow.pop %v1117
        %v1119 = vmul.f32 %v1089, 1.442695
        %v1120 = vpow.pop %v1119
        %v1121 = vmul.f32 %v1090, 1.442695
        %v1122 = vpow.pop %v1121
        %1123 = vadd.xlane.f32.xlu0 %v1092
        %v1124 = vpop.xlane.xlu0 %1123
        %1125 = vadd.xlane.f32.xlu0 %v1094
        %v1126 = vpop.xlane.xlu0 %1125
        %1127 = vadd.xlane.f32.xlu0 %v1096
        %v1128 = vpop.xlane.xlu0 %1127
        %1129 = vadd.xlane.f32.xlu0 %v1098
        %v1130 = vpop.xlane.xlu0 %1129
        %1131 = vadd.xlane.f32.xlu0 %v1100
        %v1132 = vpop.xlane.xlu0 %1131
        %1133 = vadd.xlane.f32.xlu0 %v1102
        %v1134 = vpop.xlane.xlu0 %1133
        %1135 = vadd.xlane.f32.xlu0 %v1104
        %v1136 = vpop.xlane.xlu0 %1135
        %1137 = vadd.xlane.f32.xlu0 %v1106
        %v1138 = vpop.xlane.xlu0 %1137
        %1139 = vadd.xlane.f32.xlu0 %v1108
        %v1140 = vpop.xlane.xlu0 %1139
        %1141 = vadd.xlane.f32.xlu0 %v1110
        %v1142 = vpop.xlane.xlu0 %1141
        %1143 = vadd.xlane.f32.xlu0 %v1112
        %v1144 = vpop.xlane.xlu0 %1143
        %1145 = vadd.xlane.f32.xlu0 %v1114
        %v1146 = vpop.xlane.xlu0 %1145
        %1147 = vadd.xlane.f32.xlu0 %v1116
        %v1148 = vpop.xlane.xlu0 %1147
        %1149 = vadd.xlane.f32.xlu0 %v1118
        %v1150 = vpop.xlane.xlu0 %1149
        %1151 = vadd.xlane.f32.xlu0 %v1120
        %v1152 = vpop.xlane.xlu0 %1151
        %1153 = vadd.xlane.f32.xlu0 %v1122
        %v1154 = vpop.xlane.xlu0 %1153
        %v1155 = vrcp.pop %v1124
        %v1156 = vmul.f32 %v1092, %v1155
        %v1157 = vrcp.pop %v1126
        %v1158 = vmul.f32 %v1094, %v1157
        %v1159 = vrcp.pop %v1128
        %v1160 = vmul.f32 %v1096, %v1159
        %v1161 = vrcp.pop %v1130
        %v1162 = vmul.f32 %v1098, %v1161
        %v1163 = vrcp.pop %v1132
        %v1164 = vmul.f32 %v1100, %v1163
        %v1165 = vrcp.pop %v1134
        %v1166 = vmul.f32 %v1102, %v1165
        %v1167 = vrcp.pop %v1136
        %v1168 = vmul.f32 %v1104, %v1167
        %v1169 = vrcp.pop %v1138
        %v1170 = vmul.f32 %v1106, %v1169
        %v1171 = vrcp.pop %v1140
        %v1172 = vmul.f32 %v1108, %v1171
        %v1173 = vrcp.pop %v1142
        %v1174 = vmul.f32 %v1110, %v1173
        %v1175 = vrcp.pop %v1144
        %v1176 = vmul.f32 %v1112, %v1175
        %v1177 = vrcp.pop %v1146
        %v1178 = vmul.f32 %v1114, %v1177
        %v1179 = vrcp.pop %v1148
        %v1180 = vmul.f32 %v1116, %v1179
        %v1181 = vrcp.pop %v1150
        %v1182 = vmul.f32 %v1118, %v1181
        %v1183 = vrcp.pop %v1152
        %v1184 = vmul.f32 %v1120, %v1183
        %v1185 = vrcp.pop %v1154
        %v1186 = vmul.f32 %v1122, %v1185
        %1187 = vmatprep.subr.mxu0 0.0
        %1188 = vmatpush1.msra.mxu0 %v863
        %1189 = vmatprep.subr.mxu0 0.0
        %1190 = vmatpush1.msra.mxu0 %v858
        %1191 = vmatprep.subr.mxu0 0.0
        %1192 = vmatpush1.msra.mxu0 %v853
        %1193 = vmatprep.subr.mxu0 0.0
        %1194 = vmatpush1.msra.mxu0 %v848
        %1195 = vmatprep.subr.mxu0 0.0
        %1196 = vmatpush1.msra.mxu0 %v843
        %1197 = vmatprep.subr.mxu0 0.0
        %1198 = vmatpush1.msra.mxu0 %v838
        %1199 = vmatprep.subr.mxu0 0.0
        %1200 = vmatpush1.msra.mxu0 %v833
        %1201 = vmatprep.subr.mxu0 0.0
        %1202 = vmatpush1.msra.mxu0 %v828
        %1203 = vmatprep.subr.mxu0 0.0
        %1204 = vmatpush1.msra.mxu0 %v823
        %1205 = vmatprep.subr.mxu0 0.0
        %1206 = vmatpush1.msra.mxu0 %v818
        %1207 = vmatprep.subr.mxu0 0.0
        %1208 = vmatpush1.msra.mxu0 %v813
        %1209 = vmatprep.subr.mxu0 0.0
        %1210 = vmatpush1.msra.mxu0 %v808
        %1211 = vmatprep.subr.mxu0 0.0
        %1212 = vmatpush1.msra.mxu0 %v803
        %1213 = vmatprep.subr.mxu0 0.0
        %1214 = vmatpush1.msra.mxu0 %v798
        %1215 = vmatprep.subr.mxu0 0.0
        %1216 = vmatpush1.msra.mxu0 %v793
        %1217 = vmatprep.subr.mxu0 0.0
        %1218 = vmatpush1.msra.mxu0 %v788
        %1219 = vmatprep.subr.mxu0 0.0
        %1220 = vmatpush2.msra.mxu0 0.0
        %1221 = vmatprep.subr.mxu0 0.0
        %1222 = vmatpush2.msra.mxu0 0.0
        %1223 = vmatprep.subr.mxu0 0.0
        %1224 = vmatpush2.msra.mxu0 0.0
        %1225 = vmatprep.subr.mxu0 0.0
        %1226 = vmatpush2.msra.mxu0 0.0
        %1227 = vmatprep.subr.mxu0 0.0
        %1228 = vmatpush2.msra.mxu0 0.0
        %1229 = vmatprep.subr.mxu0 0.0
        %1230 = vmatpush2.msra.mxu0 0.0
        %1231 = vmatprep.subr.mxu0 0.0
        %1232 = vmatpush2.msra.mxu0 0.0
        %1233 = vmatprep.subr.mxu0 0.0
        %1234 = vmatpush2.msra.mxu0 0.0
        %1235 = vmatprep.subr.mxu0 0.0
        %1236 = vmatpush2.msra.mxu0 0.0
        %1237 = vmatprep.subr.mxu0 0.0
        %1238 = vmatpush2.msra.mxu0 0.0
        %1239 = vmatprep.subr.mxu0 0.0
        %1240 = vmatpush2.msra.mxu0 0.0
        %1241 = vmatprep.subr.mxu0 0.0
        %1242 = vmatpush2.msra.mxu0 0.0
        %1243 = vmatprep.subr.mxu0 0.0
        %1244 = vmatpush2.msra.mxu0 0.0
        %1245 = vmatprep.subr.mxu0 0.0
        %1246 = vmatpush2.msra.mxu0 0.0
        %1247 = vmatprep.subr.mxu0 0.0
        %1248 = vmatpush2.msra.mxu0 0.0
        %1249 = vmatprep.subr.mxu0 0.0
        %1250 = vmatpush2.msra.mxu0 0.0
        %1251 = vmatprep.mubr.f32.mxu0 0.0
        %1252 = vmatmul.mubr.f32.gmra.mxu0 %v1156
        %v1253 = vpop.f32.mrf.mxu0
        %v1254 = vadd.f32 0.0, %v1253
        %v1255 = vpop.f32.mrf.mxu0
        %1256 = vmatprep.mubr.f32.mxu0 0.0
        %1257 = vmatmul.mubr.f32.gmra.mxu0 %v1158
        %v1258 = vpop.f32.mrf.mxu0
        %v1259 = vadd.f32 0.0, %v1258
        %v1260 = vpop.f32.mrf.mxu0
        %1261 = vmatprep.mubr.f32.mxu0 0.0
        %1262 = vmatmul.mubr.f32.gmra.mxu0 %v1160
        %v1263 = vpop.f32.mrf.mxu0
        %v1264 = vadd.f32 0.0, %v1263
        %v1265 = vpop.f32.mrf.mxu0
        %1266 = vmatprep.mubr.f32.mxu0 0.0
        %1267 = vmatmul.mubr.f32.gmra.mxu0 %v1162
        %v1268 = vpop.f32.mrf.mxu0
        %v1269 = vadd.f32 0.0, %v1268
        %v1270 = vpop.f32.mrf.mxu0
        %1271 = vmatprep.mubr.f32.mxu0 0.0
        %1272 = vmatmul.mubr.f32.gmra.mxu0 %v1164
        %v1273 = vpop.f32.mrf.mxu0
        %v1274 = vadd.f32 0.0, %v1273
        %v1275 = vpop.f32.mrf.mxu0
        %1276 = vmatprep.mubr.f32.mxu0 0.0
        %1277 = vmatmul.mubr.f32.gmra.mxu0 %v1166
        %v1278 = vpop.f32.mrf.mxu0
        %v1279 = vadd.f32 0.0, %v1278
        %v1280 = vpop.f32.mrf.mxu0
        %1281 = vmatprep.mubr.f32.mxu0 0.0
        %1282 = vmatmul.mubr.f32.gmra.mxu0 %v1168
        %v1283 = vpop.f32.mrf.mxu0
        %v1284 = vadd.f32 0.0, %v1283
        %v1285 = vpop.f32.mrf.mxu0
        %1286 = vmatprep.mubr.f32.mxu0 0.0
        %1287 = vmatmul.mubr.f32.gmra.mxu0 %v1170
        %v1288 = vpop.f32.mrf.mxu0
        %v1289 = vadd.f32 0.0, %v1288
        %v1290 = vpop.f32.mrf.mxu0
        %1291 = vmatprep.mubr.f32.mxu0 0.0
        %1292 = vmatmul.mubr.f32.gmra.mxu0 %v1172
        %v1293 = vpop.f32.mrf.mxu0
        %v1294 = vadd.f32 0.0, %v1293
        %v1295 = vpop.f32.mrf.mxu0
        %1296 = vmatprep.mubr.f32.mxu0 0.0
        %1297 = vmatmul.mubr.f32.gmra.mxu0 %v1174
        %v1298 = vpop.f32.mrf.mxu0
        %v1299 = vadd.f32 0.0, %v1298
        %v1300 = vpop.f32.mrf.mxu0
        %1301 = vmatprep.mubr.f32.mxu0 0.0
        %1302 = vmatmul.mubr.f32.gmra.mxu0 %v1176
        %v1303 = vpop.f32.mrf.mxu0
        %v1304 = vadd.f32 0.0, %v1303
        %v1305 = vpop.f32.mrf.mxu0
        %1306 = vmatprep.mubr.f32.mxu0 0.0
        %1307 = vmatmul.mubr.f32.gmra.mxu0 %v1178
        %v1308 = vpop.f32.mrf.mxu0
        %v1309 = vadd.f32 0.0, %v1308
        %v1310 = vpop.f32.mrf.mxu0
        %1311 = vmatprep.mubr.f32.mxu0 0.0
        %1312 = vmatmul.mubr.f32.gmra.mxu0 %v1180
        %v1313 = vpop.f32.mrf.mxu0
        %v1314 = vadd.f32 0.0, %v1313
        %v1315 = vpop.f32.mrf.mxu0
        %1316 = vmatprep.mubr.f32.mxu0 0.0
        %1317 = vmatmul.mubr.f32.gmra.mxu0 %v1182
        %v1318 = vpop.f32.mrf.mxu0
        %v1319 = vadd.f32 0.0, %v1318
        %v1320 = vpop.f32.mrf.mxu0
        %1321 = vmatprep.mubr.f32.mxu0 0.0
        %1322 = vmatmul.mubr.f32.gmra.mxu0 %v1184
        %v1323 = vpop.f32.mrf.mxu0
        %v1324 = vadd.f32 0.0, %v1323
        %v1325 = vpop.f32.mrf.mxu0
        %1326 = vmatprep.mubr.f32.mxu0 0.0
        %1327 = vmatmul.mubr.f32.gmra.mxu0 %v1186
        %v1328 = vpop.f32.mrf.mxu0
        %v1329 = vadd.f32 0.0, %v1328
        %v1330 = vpop.f32.mrf.mxu0
        %1331 = vdwg.mxu0
        %1332 = vst [vmem:[#allocation2] sm:$0xff] %v1254
        %1333 = vst [vmem:[#allocation2 + $0x10] sm:$0xff] %v1259
        %1334 = vst [vmem:[#allocation2 + $0x20] sm:$0xff] %v1264
        %1335 = vst [vmem:[#allocation2 + $0x30] sm:$0xff] %v1269
        %1336 = vst [vmem:[#allocation2 + $0x40] sm:$0xff] %v1274
        %1337 = vst [vmem:[#allocation2 + $0x50] sm:$0xff] %v1279
        %1338 = vst [vmem:[#allocation2 + $0x60] sm:$0xff] %v1284
        %1339 = vst [vmem:[#allocation2 + $0x70] sm:$0xff] %v1289
        %1340 = vst [vmem:[#allocation2 + $0x80] sm:$0xff] %v1294
        %1341 = vst [vmem:[#allocation2 + $0x90] sm:$0xff] %v1299
        %1342 = vst [vmem:[#allocation2 + $0xa0] sm:$0xff] %v1304
        %1343 = vst [vmem:[#allocation2 + $0xb0] sm:$0xff] %v1309
        %1344 = vst [vmem:[#allocation2 + $0xc0] sm:$0xff] %v1314
        %1345 = vst [vmem:[#allocation2 + $0xd0] sm:$0xff] %v1319
        %1346 = vst [vmem:[#allocation2 + $0xe0] sm:$0xff] %v1324
        %1347 = vst [vmem:[#allocation2 + $0xf0] sm:$0xff] %v1329
        %v1348 = vld [vmem:[#allocation6 + $0x8] sm:$0xff]
        %v1349 = vld [vmem:[#allocation6 + $0x38] sm:$0xff]
        %v1350 = vld [vmem:[#allocation6 + $0x68] sm:$0xff]
        %v1351 = vld [vmem:[#allocation6 + $0x98] sm:$0xff]
        %v1352 = vld [vmem:[#allocation6 + $0xc8] sm:$0xff]
        %v1353 = vld [vmem:[#allocation6 + $0xf8] sm:$0xff]
        %v1354 = vld [vmem:[#allocation6 + $0x128] sm:$0xff]
        %v1355 = vld [vmem:[#allocation6 + $0x158] sm:$0xff]
        %v1356 = vld [vmem:[#allocation6 + $0x188] sm:$0xff]
        %v1357 = vld [vmem:[#allocation6 + $0x1b8] sm:$0xff]
        %v1358 = vld [vmem:[#allocation6 + $0x1e8] sm:$0xff]
        %v1359 = vld [vmem:[#allocation6 + $0x218] sm:$0xff]
        %v1360 = vld [vmem:[#allocation6 + $0x248] sm:$0xff]
        %v1361 = vld [vmem:[#allocation6 + $0x278] sm:$0xff]
        %v1362 = vld [vmem:[#allocation6 + $0x2a8] sm:$0xff]
        %v1363 = vld [vmem:[#allocation6 + $0x2d8] sm:$0xff]
        %v1364 = vld [vmem:[#allocation6 + $0x308] sm:$0xff]
        %v1365 = vld [vmem:[#allocation6 + $0x338] sm:$0xff]
        %v1366 = vld [vmem:[#allocation6 + $0x368] sm:$0xff]
        %v1367 = vld [vmem:[#allocation6 + $0x398] sm:$0xff]
        %v1368 = vld [vmem:[#allocation6 + $0x3c8] sm:$0xff]
        %v1369 = vld [vmem:[#allocation6 + $0x3f8] sm:$0xff]
        %v1370 = vld [vmem:[#allocation6 + $0x428] sm:$0xff]
        %v1371 = vld [vmem:[#allocation6 + $0x458] sm:$0xff]
        %v1372 = vld [vmem:[#allocation6 + $0x488] sm:$0xff]
        %v1373 = vld [vmem:[#allocation6 + $0x4b8] sm:$0xff]
        %v1374 = vld [vmem:[#allocation6 + $0x4e8] sm:$0xff]
        %v1375 = vld [vmem:[#allocation6 + $0x518] sm:$0xff]
        %v1376 = vld [vmem:[#allocation6 + $0x548] sm:$0xff]
        %v1377 = vld [vmem:[#allocation6 + $0x578] sm:$0xff]
        %v1378 = vld [vmem:[#allocation6 + $0x5a8] sm:$0xff]
        %v1379 = vld [vmem:[#allocation6 + $0x5d8] sm:$0xff]
        %v1380 = vld [vmem:[#allocation6 + $0x18] sm:$0xff]
        %v1381 = vld [vmem:[#allocation6 + $0x48] sm:$0xff]
        %v1382 = vld [vmem:[#allocation6 + $0x78] sm:$0xff]
        %v1383 = vld [vmem:[#allocation6 + $0xa8] sm:$0xff]
        %v1384 = vld [vmem:[#allocation6 + $0xd8] sm:$0xff]
        %v1385 = vld [vmem:[#allocation6 + $0x108] sm:$0xff]
        %v1386 = vld [vmem:[#allocation6 + $0x138] sm:$0xff]
        %v1387 = vld [vmem:[#allocation6 + $0x168] sm:$0xff]
        %v1388 = vld [vmem:[#allocation6 + $0x198] sm:$0xff]
        %v1389 = vld [vmem:[#allocation6 + $0x1c8] sm:$0xff]
        %v1390 = vld [vmem:[#allocation6 + $0x1f8] sm:$0xff]
        %v1391 = vld [vmem:[#allocation6 + $0x228] sm:$0xff]
        %v1392 = vld [vmem:[#allocation6 + $0x258] sm:$0xff]
        %v1393 = vld [vmem:[#allocation6 + $0x288] sm:$0xff]
        %v1394 = vld [vmem:[#allocation6 + $0x2b8] sm:$0xff]
        %v1395 = vld [vmem:[#allocation6 + $0x2e8] sm:$0xff]
        %v1396 = vld [vmem:[#allocation6 + $0x318] sm:$0xff]
        %v1397 = vld [vmem:[#allocation6 + $0x348] sm:$0xff]
        %v1398 = vld [vmem:[#allocation6 + $0x378] sm:$0xff]
        %v1399 = vld [vmem:[#allocation6 + $0x3a8] sm:$0xff]
        %v1400 = vld [vmem:[#allocation6 + $0x3d8] sm:$0xff]
        %v1401 = vld [vmem:[#allocation6 + $0x408] sm:$0xff]
        %v1402 = vld [vmem:[#allocation6 + $0x438] sm:$0xff]
        %v1403 = vld [vmem:[#allocation6 + $0x468] sm:$0xff]
        %v1404 = vld [vmem:[#allocation6 + $0x498] sm:$0xff]
        %v1405 = vld [vmem:[#allocation6 + $0x4c8] sm:$0xff]
        %v1406 = vld [vmem:[#allocation6 + $0x4f8] sm:$0xff]
        %v1407 = vld [vmem:[#allocation6 + $0x528] sm:$0xff]
        %v1408 = vld [vmem:[#allocation6 + $0x558] sm:$0xff]
        %v1409 = vld [vmem:[#allocation6 + $0x588] sm:$0xff]
        %v1410 = vld [vmem:[#allocation6 + $0x5b8] sm:$0xff]
        %v1411 = vld [vmem:[#allocation6 + $0x5e8] sm:$0xff]
        %v1412 = vld [vmem:[#allocation6 + $0x28] sm:$0xff]
        %v1413 = vld [vmem:[#allocation6 + $0x58] sm:$0xff]
        %v1414 = vld [vmem:[#allocation6 + $0x88] sm:$0xff]
        %v1415 = vld [vmem:[#allocation6 + $0xb8] sm:$0xff]
        %v1416 = vld [vmem:[#allocation6 + $0xe8] sm:$0xff]
        %v1417 = vld [vmem:[#allocation6 + $0x118] sm:$0xff]
        %v1418 = vld [vmem:[#allocation6 + $0x148] sm:$0xff]
        %v1419 = vld [vmem:[#allocation6 + $0x178] sm:$0xff]
        %v1420 = vld [vmem:[#allocation6 + $0x1a8] sm:$0xff]
        %v1421 = vld [vmem:[#allocation6 + $0x1d8] sm:$0xff]
        %v1422 = vld [vmem:[#allocation6 + $0x208] sm:$0xff]
        %v1423 = vld [vmem:[#allocation6 + $0x238] sm:$0xff]
        %v1424 = vld [vmem:[#allocation6 + $0x268] sm:$0xff]
        %v1425 = vld [vmem:[#allocation6 + $0x298] sm:$0xff]
        %v1426 = vld [vmem:[#allocation6 + $0x2c8] sm:$0xff]
        %v1427 = vld [vmem:[#allocation6 + $0x2f8] sm:$0xff]
        %v1428 = vld [vmem:[#allocation6 + $0x328] sm:$0xff]
        %v1429 = vld [vmem:[#allocation6 + $0x358] sm:$0xff]
        %v1430 = vld [vmem:[#allocation6 + $0x388] sm:$0xff]
        %v1431 = vld [vmem:[#allocation6 + $0x3b8] sm:$0xff]
        %v1432 = vld [vmem:[#allocation6 + $0x3e8] sm:$0xff]
        %v1433 = vld [vmem:[#allocation6 + $0x418] sm:$0xff]
        %v1434 = vld [vmem:[#allocation6 + $0x448] sm:$0xff]
        %v1435 = vld [vmem:[#allocation6 + $0x478] sm:$0xff]
        %v1436 = vld [vmem:[#allocation6 + $0x4a8] sm:$0xff]
        %v1437 = vld [vmem:[#allocation6 + $0x4d8] sm:$0xff]
        %v1438 = vld [vmem:[#allocation6 + $0x508] sm:$0xff]
        %v1439 = vld [vmem:[#allocation6 + $0x538] sm:$0xff]
        %v1440 = vld [vmem:[#allocation6 + $0x568] sm:$0xff]
        %v1441 = vld [vmem:[#allocation6 + $0x598] sm:$0xff]
        %v1442 = vld [vmem:[#allocation6 + $0x5c8] sm:$0xff]
        %v1443 = vld [vmem:[#allocation6 + $0x5f8] sm:$0xff]
        %1444 = vmatprep.subr.mxu0 0.0
        %1445 = vmatpush1.msra.mxu0 %v1363
        %1446 = vmatprep.subr.mxu0 0.0
        %1447 = vmatpush1.msra.mxu0 %v1362
        %1448 = vmatprep.subr.mxu0 0.0
        %1449 = vmatpush1.msra.mxu0 %v1361
        %1450 = vmatprep.subr.mxu0 0.0
        %1451 = vmatpush1.msra.mxu0 %v1360
        %1452 = vmatprep.subr.mxu0 0.0
        %1453 = vmatpush1.msra.mxu0 %v1359
        %1454 = vmatprep.subr.mxu0 0.0
        %1455 = vmatpush1.msra.mxu0 %v1358
        %1456 = vmatprep.subr.mxu0 0.0
        %1457 = vmatpush1.msra.mxu0 %v1357
        %1458 = vmatprep.subr.mxu0 0.0
        %1459 = vmatpush1.msra.mxu0 %v1356
        %1460 = vmatprep.subr.mxu0 0.0
        %1461 = vmatpush1.msra.mxu0 %v1355
        %1462 = vmatprep.subr.mxu0 0.0
        %1463 = vmatpush1.msra.mxu0 %v1354
        %1464 = vmatprep.subr.mxu0 0.0
        %1465 = vmatpush1.msra.mxu0 %v1353
        %1466 = vmatprep.subr.mxu0 0.0
        %1467 = vmatpush1.msra.mxu0 %v1352
        %1468 = vmatprep.subr.mxu0 0.0
        %1469 = vmatpush1.msra.mxu0 %v1351
        %1470 = vmatprep.subr.mxu0 0.0
        %1471 = vmatpush1.msra.mxu0 %v1350
        %1472 = vmatprep.subr.mxu0 0.0
        %1473 = vmatpush1.msra.mxu0 %v1349
        %1474 = vmatprep.subr.mxu0 0.0
        %1475 = vmatpush1.msra.mxu0 %v1348
        %1476 = vmatprep.subr.mxu0 0.0
        %1477 = vmatpush2.msra.mxu0 %v1379
        %1478 = vmatprep.subr.mxu0 0.0
        %1479 = vmatpush2.msra.mxu0 %v1378
        %1480 = vmatprep.subr.mxu0 0.0
        %1481 = vmatpush2.msra.mxu0 %v1377
        %1482 = vmatprep.subr.mxu0 0.0
        %1483 = vmatpush2.msra.mxu0 %v1376
        %1484 = vmatprep.subr.mxu0 0.0
        %1485 = vmatpush2.msra.mxu0 %v1375
        %1486 = vmatprep.subr.mxu0 0.0
        %1487 = vmatpush2.msra.mxu0 %v1374
        %1488 = vmatprep.subr.mxu0 0.0
        %1489 = vmatpush2.msra.mxu0 %v1373
        %1490 = vmatprep.subr.mxu0 0.0
        %1491 = vmatpush2.msra.mxu0 %v1372
        %1492 = vmatprep.subr.mxu0 0.0
        %1493 = vmatpush2.msra.mxu0 %v1371
        %1494 = vmatprep.subr.mxu0 0.0
        %1495 = vmatpush2.msra.mxu0 %v1370
        %1496 = vmatprep.subr.mxu0 0.0
        %1497 = vmatpush2.msra.mxu0 %v1369
        %1498 = vmatprep.subr.mxu0 0.0
        %1499 = vmatpush2.msra.mxu0 %v1368
        %1500 = vmatprep.subr.mxu0 0.0
        %1501 = vmatpush2.msra.mxu0 %v1367
        %1502 = vmatprep.subr.mxu0 0.0
        %1503 = vmatpush2.msra.mxu0 %v1366
        %1504 = vmatprep.subr.mxu0 0.0
        %1505 = vmatpush2.msra.mxu0 %v1365
        %1506 = vmatprep.subr.mxu0 0.0
        %1507 = vmatpush2.msra.mxu0 %v1364
        %1508 = vmatprep.mubr.f32.mxu0 %v288
        %1509 = vmatmul.mubr.f32.gmra.mxu0 %v287
        %v1510 = vpop.f32.mrf.mxu0
        %v1511 = vadd.f32 0.0, %v1510
        %v1512 = vpop.f32.mrf.mxu0
        %1513 = vmatprep.mubr.f32.mxu0 %v290
        %1514 = vmatmul.mubr.f32.gmra.mxu0 %v289
        %v1515 = vpop.f32.mrf.mxu0
        %v1516 = vadd.f32 0.0, %v1515
        %v1517 = vpop.f32.mrf.mxu0
        %1518 = vmatprep.mubr.f32.mxu0 %v292
        %1519 = vmatmul.mubr.f32.gmra.mxu0 %v291
        %v1520 = vpop.f32.mrf.mxu0
        %v1521 = vadd.f32 0.0, %v1520
        %v1522 = vpop.f32.mrf.mxu0
        %1523 = vmatprep.mubr.f32.mxu0 %v294
        %1524 = vmatmul.mubr.f32.gmra.mxu0 %v293
        %v1525 = vpop.f32.mrf.mxu0
        %v1526 = vadd.f32 0.0, %v1525
        %v1527 = vpop.f32.mrf.mxu0
        %1528 = vmatprep.mubr.f32.mxu0 %v296
        %1529 = vmatmul.mubr.f32.gmra.mxu0 %v295
        %v1530 = vpop.f32.mrf.mxu0
        %v1531 = vadd.f32 0.0, %v1530
        %v1532 = vpop.f32.mrf.mxu0
        %1533 = vmatprep.mubr.f32.mxu0 %v298
        %1534 = vmatmul.mubr.f32.gmra.mxu0 %v297
        %v1535 = vpop.f32.mrf.mxu0
        %v1536 = vadd.f32 0.0, %v1535
        %v1537 = vpop.f32.mrf.mxu0
        %1538 = vmatprep.mubr.f32.mxu0 %v300
        %1539 = vmatmul.mubr.f32.gmra.mxu0 %v299
        %v1540 = vpop.f32.mrf.mxu0
        %v1541 = vadd.f32 0.0, %v1540
        %v1542 = vpop.f32.mrf.mxu0
        %1543 = vmatprep.mubr.f32.mxu0 %v302
        %1544 = vmatmul.mubr.f32.gmra.mxu0 %v301
        %v1545 = vpop.f32.mrf.mxu0
        %v1546 = vadd.f32 0.0, %v1545
        %v1547 = vpop.f32.mrf.mxu0
        %1548 = vmatprep.mubr.f32.mxu0 %v304
        %1549 = vmatmul.mubr.f32.gmra.mxu0 %v303
        %v1550 = vpop.f32.mrf.mxu0
        %v1551 = vadd.f32 0.0, %v1550
        %v1552 = vpop.f32.mrf.mxu0
        %1553 = vmatprep.mubr.f32.mxu0 %v306
        %1554 = vmatmul.mubr.f32.gmra.mxu0 %v305
        %v1555 = vpop.f32.mrf.mxu0
        %v1556 = vadd.f32 0.0, %v1555
        %v1557 = vpop.f32.mrf.mxu0
        %1558 = vmatprep.mubr.f32.mxu0 %v308
        %1559 = vmatmul.mubr.f32.gmra.mxu0 %v307
        %v1560 = vpop.f32.mrf.mxu0
        %v1561 = vadd.f32 0.0, %v1560
        %v1562 = vpop.f32.mrf.mxu0
        %1563 = vmatprep.mubr.f32.mxu0 %v310
        %1564 = vmatmul.mubr.f32.gmra.mxu0 %v309
        %v1565 = vpop.f32.mrf.mxu0
        %v1566 = vadd.f32 0.0, %v1565
        %v1567 = vpop.f32.mrf.mxu0
        %1568 = vmatprep.mubr.f32.mxu0 %v312
        %1569 = vmatmul.mubr.f32.gmra.mxu0 %v311
        %v1570 = vpop.f32.mrf.mxu0
        %v1571 = vadd.f32 0.0, %v1570
        %v1572 = vpop.f32.mrf.mxu0
        %1573 = vmatprep.mubr.f32.mxu0 %v314
        %1574 = vmatmul.mubr.f32.gmra.mxu0 %v313
        %v1575 = vpop.f32.mrf.mxu0
        %v1576 = vadd.f32 0.0, %v1575
        %v1577 = vpop.f32.mrf.mxu0
        %1578 = vmatprep.mubr.f32.mxu0 %v316
        %1579 = vmatmul.mubr.f32.gmra.mxu0 %v315
        %v1580 = vpop.f32.mrf.mxu0
        %v1581 = vadd.f32 0.0, %v1580
        %v1582 = vpop.f32.mrf.mxu0
        %1583 = vmatprep.mubr.f32.mxu0 %v318
        %1584 = vmatmul.mubr.f32.gmra.mxu0 %v317
        %v1585 = vpop.f32.mrf.mxu0
        %v1586 = vadd.f32 0.0, %v1585
        %v1587 = vpop.f32.mrf.mxu0
        %1588 = vdwg.mxu0
        %1589 = vmatprep.subr.mxu0 0.0
        %1590 = vmatpush1.msra.mxu0 %v1395
        %1591 = vmatprep.subr.mxu0 0.0
        %1592 = vmatpush1.msra.mxu0 %v1394
        %1593 = vmatprep.subr.mxu0 0.0
        %1594 = vmatpush1.msra.mxu0 %v1393
        %1595 = vmatprep.subr.mxu0 0.0
        %1596 = vmatpush1.msra.mxu0 %v1392
        %1597 = vmatprep.subr.mxu0 0.0
        %1598 = vmatpush1.msra.mxu0 %v1391
        %1599 = vmatprep.subr.mxu0 0.0
        %1600 = vmatpush1.msra.mxu0 %v1390
        %1601 = vmatprep.subr.mxu0 0.0
        %1602 = vmatpush1.msra.mxu0 %v1389
        %1603 = vmatprep.subr.mxu0 0.0
        %1604 = vmatpush1.msra.mxu0 %v1388
        %1605 = vmatprep.subr.mxu0 0.0
        %1606 = vmatpush1.msra.mxu0 %v1387
        %1607 = vmatprep.subr.mxu0 0.0
        %1608 = vmatpush1.msra.mxu0 %v1386
        %1609 = vmatprep.subr.mxu0 0.0
        %1610 = vmatpush1.msra.mxu0 %v1385
        %1611 = vmatprep.subr.mxu0 0.0
        %1612 = vmatpush1.msra.mxu0 %v1384
        %1613 = vmatprep.subr.mxu0 0.0
        %1614 = vmatpush1.msra.mxu0 %v1383
        %1615 = vmatprep.subr.mxu0 0.0
        %1616 = vmatpush1.msra.mxu0 %v1382
        %1617 = vmatprep.subr.mxu0 0.0
        %1618 = vmatpush1.msra.mxu0 %v1381
        %1619 = vmatprep.subr.mxu0 0.0
        %1620 = vmatpush1.msra.mxu0 %v1380
        %1621 = vmatprep.subr.mxu0 0.0
        %1622 = vmatpush2.msra.mxu0 %v1411
        %1623 = vmatprep.subr.mxu0 0.0
        %1624 = vmatpush2.msra.mxu0 %v1410
        %1625 = vmatprep.subr.mxu0 0.0
        %1626 = vmatpush2.msra.mxu0 %v1409
        %1627 = vmatprep.subr.mxu0 0.0
        %1628 = vmatpush2.msra.mxu0 %v1408
        %1629 = vmatprep.subr.mxu0 0.0
        %1630 = vmatpush2.msra.mxu0 %v1407
        %1631 = vmatprep.subr.mxu0 0.0
        %1632 = vmatpush2.msra.mxu0 %v1406
        %1633 = vmatprep.subr.mxu0 0.0
        %1634 = vmatpush2.msra.mxu0 %v1405
        %1635 = vmatprep.subr.mxu0 0.0
        %1636 = vmatpush2.msra.mxu0 %v1404
        %1637 = vmatprep.subr.mxu0 0.0
        %1638 = vmatpush2.msra.mxu0 %v1403
        %1639 = vmatprep.subr.mxu0 0.0
        %1640 = vmatpush2.msra.mxu0 %v1402
        %1641 = vmatprep.subr.mxu0 0.0
        %1642 = vmatpush2.msra.mxu0 %v1401
        %1643 = vmatprep.subr.mxu0 0.0
        %1644 = vmatpush2.msra.mxu0 %v1400
        %1645 = vmatprep.subr.mxu0 0.0
        %1646 = vmatpush2.msra.mxu0 %v1399
        %1647 = vmatprep.subr.mxu0 0.0
        %1648 = vmatpush2.msra.mxu0 %v1398
        %1649 = vmatprep.subr.mxu0 0.0
        %1650 = vmatpush2.msra.mxu0 %v1397
        %1651 = vmatprep.subr.mxu0 0.0
        %1652 = vmatpush2.msra.mxu0 %v1396
        %1653 = vmatprep.mubr.f32.mxu0 %v288
        %1654 = vmatmul.mubr.f32.gmra.mxu0 %v287
        %v1655 = vpop.f32.mrf.mxu0
        %v1656 = vadd.f32 0.0, %v1655
        %v1657 = vpop.f32.mrf.mxu0
        %1658 = vmatprep.mubr.f32.mxu0 %v290
        %1659 = vmatmul.mubr.f32.gmra.mxu0 %v289
        %v1660 = vpop.f32.mrf.mxu0
        %v1661 = vadd.f32 0.0, %v1660
        %v1662 = vpop.f32.mrf.mxu0
        %1663 = vmatprep.mubr.f32.mxu0 %v292
        %1664 = vmatmul.mubr.f32.gmra.mxu0 %v291
        %v1665 = vpop.f32.mrf.mxu0
        %v1666 = vadd.f32 0.0, %v1665
        %v1667 = vpop.f32.mrf.mxu0
        %1668 = vmatprep.mubr.f32.mxu0 %v294
        %1669 = vmatmul.mubr.f32.gmra.mxu0 %v293
        %v1670 = vpop.f32.mrf.mxu0
        %v1671 = vadd.f32 0.0, %v1670
        %v1672 = vpop.f32.mrf.mxu0
        %1673 = vmatprep.mubr.f32.mxu0 %v296
        %1674 = vmatmul.mubr.f32.gmra.mxu0 %v295
        %v1675 = vpop.f32.mrf.mxu0
        %v1676 = vadd.f32 0.0, %v1675
        %v1677 = vpop.f32.mrf.mxu0
        %1678 = vmatprep.mubr.f32.mxu0 %v298
        %1679 = vmatmul.mubr.f32.gmra.mxu0 %v297
        %v1680 = vpop.f32.mrf.mxu0
        %v1681 = vadd.f32 0.0, %v1680
        %v1682 = vpop.f32.mrf.mxu0
        %1683 = vmatprep.mubr.f32.mxu0 %v300
        %1684 = vmatmul.mubr.f32.gmra.mxu0 %v299
        %v1685 = vpop.f32.mrf.mxu0
        %v1686 = vadd.f32 0.0, %v1685
        %v1687 = vpop.f32.mrf.mxu0
        %1688 = vmatprep.mubr.f32.mxu0 %v302
        %1689 = vmatmul.mubr.f32.gmra.mxu0 %v301
        %v1690 = vpop.f32.mrf.mxu0
        %v1691 = vadd.f32 0.0, %v1690
        %v1692 = vpop.f32.mrf.mxu0
        %1693 = vmatprep.mubr.f32.mxu0 %v304
        %1694 = vmatmul.mubr.f32.gmra.mxu0 %v303
        %v1695 = vpop.f32.mrf.mxu0
        %v1696 = vadd.f32 0.0, %v1695
        %v1697 = vpop.f32.mrf.mxu0
        %1698 = vmatprep.mubr.f32.mxu0 %v306
        %1699 = vmatmul.mubr.f32.gmra.mxu0 %v305
        %v1700 = vpop.f32.mrf.mxu0
        %v1701 = vadd.f32 0.0, %v1700
        %v1702 = vpop.f32.mrf.mxu0
        %1703 = vmatprep.mubr.f32.mxu0 %v308
        %1704 = vmatmul.mubr.f32.gmra.mxu0 %v307
        %v1705 = vpop.f32.mrf.mxu0
        %v1706 = vadd.f32 0.0, %v1705
        %v1707 = vpop.f32.mrf.mxu0
        %1708 = vmatprep.mubr.f32.mxu0 %v310
        %1709 = vmatmul.mubr.f32.gmra.mxu0 %v309
        %v1710 = vpop.f32.mrf.mxu0
        %v1711 = vadd.f32 0.0, %v1710
        %v1712 = vpop.f32.mrf.mxu0
        %1713 = vmatprep.mubr.f32.mxu0 %v312
        %1714 = vmatmul.mubr.f32.gmra.mxu0 %v311
        %v1715 = vpop.f32.mrf.mxu0
        %v1716 = vadd.f32 0.0, %v1715
        %v1717 = vpop.f32.mrf.mxu0
        %1718 = vmatprep.mubr.f32.mxu0 %v314
        %1719 = vmatmul.mubr.f32.gmra.mxu0 %v313
        %v1720 = vpop.f32.mrf.mxu0
        %v1721 = vadd.f32 0.0, %v1720
        %v1722 = vpop.f32.mrf.mxu0
        %1723 = vmatprep.mubr.f32.mxu0 %v316
        %1724 = vmatmul.mubr.f32.gmra.mxu0 %v315
        %v1725 = vpop.f32.mrf.mxu0
        %v1726 = vadd.f32 0.0, %v1725
        %v1727 = vpop.f32.mrf.mxu0
        %1728 = vmatprep.mubr.f32.mxu0 %v318
        %1729 = vmatmul.mubr.f32.gmra.mxu0 %v317
        %v1730 = vpop.f32.mrf.mxu0
        %v1731 = vadd.f32 0.0, %v1730
        %v1732 = vpop.f32.mrf.mxu0
        %1733 = vdwg.mxu0
        %1734 = vmatprep.subr.mxu0 0.0
        %1735 = vmatpush1.msra.mxu0 %v1427
        %1736 = vmatprep.subr.mxu0 0.0
        %1737 = vmatpush1.msra.mxu0 %v1426
        %1738 = vmatprep.subr.mxu0 0.0
        %1739 = vmatpush1.msra.mxu0 %v1425
        %1740 = vmatprep.subr.mxu0 0.0
        %1741 = vmatpush1.msra.mxu0 %v1424
        %1742 = vmatprep.subr.mxu0 0.0
        %1743 = vmatpush1.msra.mxu0 %v1423
        %1744 = vmatprep.subr.mxu0 0.0
        %1745 = vmatpush1.msra.mxu0 %v1422
        %1746 = vmatprep.subr.mxu0 0.0
        %1747 = vmatpush1.msra.mxu0 %v1421
        %1748 = vmatprep.subr.mxu0 0.0
        %1749 = vmatpush1.msra.mxu0 %v1420
        %1750 = vmatprep.subr.mxu0 0.0
        %1751 = vmatpush1.msra.mxu0 %v1419
        %1752 = vmatprep.subr.mxu0 0.0
        %1753 = vmatpush1.msra.mxu0 %v1418
        %1754 = vmatprep.subr.mxu0 0.0
        %1755 = vmatpush1.msra.mxu0 %v1417
        %1756 = vmatprep.subr.mxu0 0.0
        %1757 = vmatpush1.msra.mxu0 %v1416
        %1758 = vmatprep.subr.mxu0 0.0
        %1759 = vmatpush1.msra.mxu0 %v1415
        %1760 = vmatprep.subr.mxu0 0.0
        %1761 = vmatpush1.msra.mxu0 %v1414
        %1762 = vmatprep.subr.mxu0 0.0
        %1763 = vmatpush1.msra.mxu0 %v1413
        %1764 = vmatprep.subr.mxu0 0.0
        %1765 = vmatpush1.msra.mxu0 %v1412
        %1766 = vmatprep.subr.mxu0 0.0
        %1767 = vmatpush2.msra.mxu0 %v1443
        %1768 = vmatprep.subr.mxu0 0.0
        %1769 = vmatpush2.msra.mxu0 %v1442
        %1770 = vmatprep.subr.mxu0 0.0
        %1771 = vmatpush2.msra.mxu0 %v1441
        %1772 = vmatprep.subr.mxu0 0.0
        %1773 = vmatpush2.msra.mxu0 %v1440
        %1774 = vmatprep.subr.mxu0 0.0
        %1775 = vmatpush2.msra.mxu0 %v1439
        %1776 = vmatprep.subr.mxu0 0.0
        %1777 = vmatpush2.msra.mxu0 %v1438
        %1778 = vmatprep.subr.mxu0 0.0
        %1779 = vmatpush2.msra.mxu0 %v1437
        %1780 = vmatprep.subr.mxu0 0.0
        %1781 = vmatpush2.msra.mxu0 %v1436
        %1782 = vmatprep.subr.mxu0 0.0
        %1783 = vmatpush2.msra.mxu0 %v1435
        %1784 = vmatprep.subr.mxu0 0.0
        %1785 = vmatpush2.msra.mxu0 %v1434
        %1786 = vmatprep.subr.mxu0 0.0
        %1787 = vmatpush2.msra.mxu0 %v1433
        %1788 = vmatprep.subr.mxu0 0.0
        %1789 = vmatpush2.msra.mxu0 %v1432
        %1790 = vmatprep.subr.mxu0 0.0
        %1791 = vmatpush2.msra.mxu0 %v1431
        %1792 = vmatprep.subr.mxu0 0.0
        %1793 = vmatpush2.msra.mxu0 %v1430
        %1794 = vmatprep.subr.mxu0 0.0
        %1795 = vmatpush2.msra.mxu0 %v1429
        %1796 = vmatprep.subr.mxu0 0.0
        %1797 = vmatpush2.msra.mxu0 %v1428
        %1798 = vmatprep.mubr.f32.mxu0 %v288
        %1799 = vmatmul.mubr.f32.gmra.mxu0 %v287
        %v1800 = vpop.f32.mrf.mxu0
        %v1801 = vadd.f32 0.0, %v1800
        %v1802 = vpop.f32.mrf.mxu0
        %1803 = vmatprep.mubr.f32.mxu0 %v290
        %1804 = vmatmul.mubr.f32.gmra.mxu0 %v289
        %v1805 = vpop.f32.mrf.mxu0
        %v1806 = vadd.f32 0.0, %v1805
        %v1807 = vpop.f32.mrf.mxu0
        %1808 = vmatprep.mubr.f32.mxu0 %v292
        %1809 = vmatmul.mubr.f32.gmra.mxu0 %v291
        %v1810 = vpop.f32.mrf.mxu0
        %v1811 = vadd.f32 0.0, %v1810
        %v1812 = vpop.f32.mrf.mxu0
        %1813 = vmatprep.mubr.f32.mxu0 %v294
        %1814 = vmatmul.mubr.f32.gmra.mxu0 %v293
        %v1815 = vpop.f32.mrf.mxu0
        %v1816 = vadd.f32 0.0, %v1815
        %v1817 = vpop.f32.mrf.mxu0
        %1818 = vmatprep.mubr.f32.mxu0 %v296
        %1819 = vmatmul.mubr.f32.gmra.mxu0 %v295
        %v1820 = vpop.f32.mrf.mxu0
        %v1821 = vadd.f32 0.0, %v1820
        %v1822 = vpop.f32.mrf.mxu0
        %1823 = vmatprep.mubr.f32.mxu0 %v298
        %1824 = vmatmul.mubr.f32.gmra.mxu0 %v297
        %v1825 = vpop.f32.mrf.mxu0
        %v1826 = vadd.f32 0.0, %v1825
        %v1827 = vpop.f32.mrf.mxu0
        %1828 = vmatprep.mubr.f32.mxu0 %v300
        %1829 = vmatmul.mubr.f32.gmra.mxu0 %v299
        %v1830 = vpop.f32.mrf.mxu0
        %v1831 = vadd.f32 0.0, %v1830
        %v1832 = vpop.f32.mrf.mxu0
        %1833 = vmatprep.mubr.f32.mxu0 %v302
        %1834 = vmatmul.mubr.f32.gmra.mxu0 %v301
        %v1835 = vpop.f32.mrf.mxu0
        %v1836 = vadd.f32 0.0, %v1835
        %v1837 = vpop.f32.mrf.mxu0
        %1838 = vmatprep.mubr.f32.mxu0 %v304
        %1839 = vmatmul.mubr.f32.gmra.mxu0 %v303
        %v1840 = vpop.f32.mrf.mxu0
        %v1841 = vadd.f32 0.0, %v1840
        %v1842 = vpop.f32.mrf.mxu0
        %1843 = vmatprep.mubr.f32.mxu0 %v306
        %1844 = vmatmul.mubr.f32.gmra.mxu0 %v305
        %v1845 = vpop.f32.mrf.mxu0
        %v1846 = vadd.f32 0.0, %v1845
        %v1847 = vpop.f32.mrf.mxu0
        %1848 = vmatprep.mubr.f32.mxu0 %v308
        %1849 = vmatmul.mubr.f32.gmra.mxu0 %v307
        %v1850 = vpop.f32.mrf.mxu0
        %v1851 = vadd.f32 0.0, %v1850
        %v1852 = vpop.f32.mrf.mxu0
        %1853 = vmatprep.mubr.f32.mxu0 %v310
        %1854 = vmatmul.mubr.f32.gmra.mxu0 %v309
        %v1855 = vpop.f32.mrf.mxu0
        %v1856 = vadd.f32 0.0, %v1855
        %v1857 = vpop.f32.mrf.mxu0
        %1858 = vmatprep.mubr.f32.mxu0 %v312
        %1859 = vmatmul.mubr.f32.gmra.mxu0 %v311
        %v1860 = vpop.f32.mrf.mxu0
        %v1861 = vadd.f32 0.0, %v1860
        %v1862 = vpop.f32.mrf.mxu0
        %1863 = vmatprep.mubr.f32.mxu0 %v314
        %1864 = vmatmul.mubr.f32.gmra.mxu0 %v313
        %v1865 = vpop.f32.mrf.mxu0
        %v1866 = vadd.f32 0.0, %v1865
        %v1867 = vpop.f32.mrf.mxu0
        %1868 = vmatprep.mubr.f32.mxu0 %v316
        %1869 = vmatmul.mubr.f32.gmra.mxu0 %v315
        %v1870 = vpop.f32.mrf.mxu0
        %v1871 = vadd.f32 0.0, %v1870
        %v1872 = vpop.f32.mrf.mxu0
        %1873 = vmatprep.mubr.f32.mxu0 %v318
        %1874 = vmatmul.mubr.f32.gmra.mxu0 %v317
        %v1875 = vpop.f32.mrf.mxu0
        %v1876 = vadd.f32 0.0, %v1875
        %v1877 = vpop.f32.mrf.mxu0
        %1878 = vdwg.mxu0
        %1879 = vmatprep.subr.mxu0 0.0
        %1880 = vmatpush1.xpose.msra.mxu0 %v1731
        %1881 = vmatprep.subr.mxu0 0.0
        %1882 = vmatpush1.xpose.msra.mxu0 %v1726
        %1883 = vmatprep.subr.mxu0 0.0
        %1884 = vmatpush1.xpose.msra.mxu0 %v1721
        %1885 = vmatprep.subr.mxu0 0.0
        %1886 = vmatpush1.xpose.msra.mxu0 %v1716
        %1887 = vmatprep.subr.mxu0 0.0
        %1888 = vmatpush1.xpose.msra.mxu0 %v1711
        %1889 = vmatprep.subr.mxu0 0.0
        %1890 = vmatpush1.xpose.msra.mxu0 %v1706
        %1891 = vmatprep.subr.mxu0 0.0
        %1892 = vmatpush1.xpose.msra.mxu0 %v1701
        %1893 = vmatprep.subr.mxu0 0.0
        %1894 = vmatpush1.xpose.msra.mxu0 %v1696
        %1895 = vmatprep.subr.mxu0 0.0
        %1896 = vmatpush1.xpose.msra.mxu0 %v1691
        %1897 = vmatprep.subr.mxu0 0.0
        %1898 = vmatpush1.xpose.msra.mxu0 %v1686
        %1899 = vmatprep.subr.mxu0 0.0
        %1900 = vmatpush1.xpose.msra.mxu0 %v1681
        %1901 = vmatprep.subr.mxu0 0.0
        %1902 = vmatpush1.xpose.msra.mxu0 %v1676
        %1903 = vmatprep.subr.mxu0 0.0
        %1904 = vmatpush1.xpose.msra.mxu0 %v1671
        %1905 = vmatprep.subr.mxu0 0.0
        %1906 = vmatpush1.xpose.msra.mxu0 %v1666
        %1907 = vmatprep.subr.mxu0 0.0
        %1908 = vmatpush1.xpose.msra.mxu0 %v1661
        %1909 = vmatprep.subr.mxu0 0.0
        %1910 = vmatpush1.xpose.msra.mxu0 %v1656
        %1911 = vmatprep.subr.mxu0 0.0
        %1912 = vmatpush2.xpose.msra.mxu0 0.0
        %1913 = vmatprep.subr.mxu0 0.0
        %1914 = vmatpush2.xpose.msra.mxu0 0.0
        %1915 = vmatprep.subr.mxu0 0.0
        %1916 = vmatpush2.xpose.msra.mxu0 0.0
        %1917 = vmatprep.subr.mxu0 0.0
        %1918 = vmatpush2.xpose.msra.mxu0 0.0
        %1919 = vmatprep.subr.mxu0 0.0
        %1920 = vmatpush2.xpose.msra.mxu0 0.0
        %1921 = vmatprep.subr.mxu0 0.0
        %1922 = vmatpush2.xpose.msra.mxu0 0.0
        %1923 = vmatprep.subr.mxu0 0.0
        %1924 = vmatpush2.xpose.msra.mxu0 0.0
        %1925 = vmatprep.subr.mxu0 0.0
        %1926 = vmatpush2.xpose.msra.mxu0 0.0
        %1927 = vmatprep.subr.mxu0 0.0
        %1928 = vmatpush2.xpose.msra.mxu0 0.0
        %1929 = vmatprep.subr.mxu0 0.0
        %1930 = vmatpush2.xpose.msra.mxu0 0.0
        %1931 = vmatprep.subr.mxu0 0.0
        %1932 = vmatpush2.xpose.msra.mxu0 0.0
        %1933 = vmatprep.subr.mxu0 0.0
        %1934 = vmatpush2.xpose.msra.mxu0 0.0
        %1935 = vmatprep.subr.mxu0 0.0
        %1936 = vmatpush2.xpose.msra.mxu0 0.0
        %1937 = vmatprep.subr.mxu0 0.0
        %1938 = vmatpush2.xpose.msra.mxu0 0.0
        %1939 = vmatprep.subr.mxu0 0.0
        %1940 = vmatpush2.xpose.msra.mxu0 0.0
        %1941 = vmatprep.subr.mxu0 0.0
        %1942 = vmatpush2.xpose.msra.mxu0 0.0
        %1943 = vmatprep.mubr.f32.mxu0 0.0
        %1944 = vmatmul.mubr.f32.gmra.mxu0 %v1511
        %v1945 = vpop.f32.mrf.mxu0
        %v1946 = vadd.f32 0.0, %v1945
        %v1947 = vpop.f32.mrf.mxu0
        %1948 = vmatprep.mubr.f32.mxu0 0.0
        %1949 = vmatmul.mubr.f32.gmra.mxu0 %v1516
        %v1950 = vpop.f32.mrf.mxu0
        %v1951 = vadd.f32 0.0, %v1950
        %v1952 = vpop.f32.mrf.mxu0
        %1953 = vmatprep.mubr.f32.mxu0 0.0
        %1954 = vmatmul.mubr.f32.gmra.mxu0 %v1521
        %v1955 = vpop.f32.mrf.mxu0
        %v1956 = vadd.f32 0.0, %v1955
        %v1957 = vpop.f32.mrf.mxu0
        %1958 = vmatprep.mubr.f32.mxu0 0.0
        %1959 = vmatmul.mubr.f32.gmra.mxu0 %v1526
        %v1960 = vpop.f32.mrf.mxu0
        %v1961 = vadd.f32 0.0, %v1960
        %v1962 = vpop.f32.mrf.mxu0
        %1963 = vmatprep.mubr.f32.mxu0 0.0
        %1964 = vmatmul.mubr.f32.gmra.mxu0 %v1531
        %v1965 = vpop.f32.mrf.mxu0
        %v1966 = vadd.f32 0.0, %v1965
        %v1967 = vpop.f32.mrf.mxu0
        %1968 = vmatprep.mubr.f32.mxu0 0.0
        %1969 = vmatmul.mubr.f32.gmra.mxu0 %v1536
        %v1970 = vpop.f32.mrf.mxu0
        %v1971 = vadd.f32 0.0, %v1970
        %v1972 = vpop.f32.mrf.mxu0
        %1973 = vmatprep.mubr.f32.mxu0 0.0
        %1974 = vmatmul.mubr.f32.gmra.mxu0 %v1541
        %v1975 = vpop.f32.mrf.mxu0
        %v1976 = vadd.f32 0.0, %v1975
        %v1977 = vpop.f32.mrf.mxu0
        %1978 = vmatprep.mubr.f32.mxu0 0.0
        %1979 = vmatmul.mubr.f32.gmra.mxu0 %v1546
        %v1980 = vpop.f32.mrf.mxu0
        %v1981 = vadd.f32 0.0, %v1980
        %v1982 = vpop.f32.mrf.mxu0
        %1983 = vmatprep.mubr.f32.mxu0 0.0
        %1984 = vmatmul.mubr.f32.gmra.mxu0 %v1551
        %v1985 = vpop.f32.mrf.mxu0
        %v1986 = vadd.f32 0.0, %v1985
        %v1987 = vpop.f32.mrf.mxu0
        %1988 = vmatprep.mubr.f32.mxu0 0.0
        %1989 = vmatmul.mubr.f32.gmra.mxu0 %v1556
        %v1990 = vpop.f32.mrf.mxu0
        %v1991 = vadd.f32 0.0, %v1990
        %v1992 = vpop.f32.mrf.mxu0
        %1993 = vmatprep.mubr.f32.mxu0 0.0
        %1994 = vmatmul.mubr.f32.gmra.mxu0 %v1561
        %v1995 = vpop.f32.mrf.mxu0
        %v1996 = vadd.f32 0.0, %v1995
        %v1997 = vpop.f32.mrf.mxu0
        %1998 = vmatprep.mubr.f32.mxu0 0.0
        %1999 = vmatmul.mubr.f32.gmra.mxu0 %v1566
        %v2000 = vpop.f32.mrf.mxu0
        %v2001 = vadd.f32 0.0, %v2000
        %v2002 = vpop.f32.mrf.mxu0
        %2003 = vmatprep.mubr.f32.mxu0 0.0
        %2004 = vmatmul.mubr.f32.gmra.mxu0 %v1571
        %v2005 = vpop.f32.mrf.mxu0
        %v2006 = vadd.f32 0.0, %v2005
        %v2007 = vpop.f32.mrf.mxu0
        %2008 = vmatprep.mubr.f32.mxu0 0.0
        %2009 = vmatmul.mubr.f32.gmra.mxu0 %v1576
        %v2010 = vpop.f32.mrf.mxu0
        %v2011 = vadd.f32 0.0, %v2010
        %v2012 = vpop.f32.mrf.mxu0
        %2013 = vmatprep.mubr.f32.mxu0 0.0
        %2014 = vmatmul.mubr.f32.gmra.mxu0 %v1581
        %v2015 = vpop.f32.mrf.mxu0
        %v2016 = vadd.f32 0.0, %v2015
        %v2017 = vpop.f32.mrf.mxu0
        %2018 = vmatprep.mubr.f32.mxu0 0.0
        %2019 = vmatmul.mubr.f32.gmra.mxu0 %v1586
        %v2020 = vpop.f32.mrf.mxu0
        %v2021 = vadd.f32 0.0, %v2020
        %v2022 = vpop.f32.mrf.mxu0
        %2023 = vdwg.mxu0
        %v2024 = vmul.f32 %v1946, 0.088388346
        %v2025 = vmul.f32 %v1951, 0.088388346
        %v2026 = vmul.f32 %v1956, 0.088388346
        %v2027 = vmul.f32 %v1961, 0.088388346
        %v2028 = vmul.f32 %v1966, 0.088388346
        %v2029 = vmul.f32 %v1971, 0.088388346
        %v2030 = vmul.f32 %v1976, 0.088388346
        %v2031 = vmul.f32 %v1981, 0.088388346
        %v2032 = vmul.f32 %v1986, 0.088388346
        %v2033 = vmul.f32 %v1991, 0.088388346
        %v2034 = vmul.f32 %v1996, 0.088388346
        %v2035 = vmul.f32 %v2001, 0.088388346
        %v2036 = vmul.f32 %v2006, 0.088388346
        %v2037 = vmul.f32 %v2011, 0.088388346
        %v2038 = vmul.f32 %v2016, 0.088388346
        %v2039 = vmul.f32 %v2021, 0.088388346
        %v2040 = vadd.f32 %v2024, %v319
        %v2041 = vadd.f32 %v2025, %v320
        %v2042 = vadd.f32 %v2026, %v321
        %v2043 = vadd.f32 %v2027, %v322
        %v2044 = vadd.f32 %v2028, %v323
        %v2045 = vadd.f32 %v2029, %v324
        %v2046 = vadd.f32 %v2030, %v325
        %v2047 = vadd.f32 %v2031, %v326
        %v2048 = vadd.f32 %v2032, %v327
        %v2049 = vadd.f32 %v2033, %v328
        %v2050 = vadd.f32 %v2034, %v329
        %v2051 = vadd.f32 %v2035, %v330
        %v2052 = vadd.f32 %v2036, %v331
        %v2053 = vadd.f32 %v2037, %v332
        %v2054 = vadd.f32 %v2038, %v333
        %v2055 = vadd.f32 %v2039, %v334
        %2056 = vmax.xlane.f32.xlu0 %v2040
        %v2057 = vpop.xlane.xlu0 %2056
        %2058 = vmax.xlane.f32.xlu0 %v2041
        %v2059 = vpop.xlane.xlu0 %2058
        %2060 = vmax.xlane.f32.xlu0 %v2042
        %v2061 = vpop.xlane.xlu0 %2060
        %2062 = vmax.xlane.f32.xlu0 %v2043
        %v2063 = vpop.xlane.xlu0 %2062
        %2064 = vmax.xlane.f32.xlu0 %v2044
        %v2065 = vpop.xlane.xlu0 %2064
        %2066 = vmax.xlane.f32.xlu0 %v2045
        %v2067 = vpop.xlane.xlu0 %2066
        %2068 = vmax.xlane.f32.xlu0 %v2046
        %v2069 = vpop.xlane.xlu0 %2068
        %2070 = vmax.xlane.f32.xlu0 %v2047
        %v2071 = vpop.xlane.xlu0 %2070
        %2072 = vmax.xlane.f32.xlu0 %v2048
        %v2073 = vpop.xlane.xlu0 %2072
        %2074 = vmax.xlane.f32.xlu0 %v2049
        %v2075 = vpop.xlane.xlu0 %2074
        %2076 = vmax.xlane.f32.xlu0 %v2050
        %v2077 = vpop.xlane.xlu0 %2076
        %2078 = vmax.xlane.f32.xlu0 %v2051
        %v2079 = vpop.xlane.xlu0 %2078
        %2080 = vmax.xlane.f32.xlu0 %v2052
        %v2081 = vpop.xlane.xlu0 %2080
        %2082 = vmax.xlane.f32.xlu0 %v2053
        %v2083 = vpop.xlane.xlu0 %2082
        %2084 = vmax.xlane.f32.xlu0 %v2054
        %v2085 = vpop.xlane.xlu0 %2084
        %2086 = vmax.xlane.f32.xlu0 %v2055
        %v2087 = vpop.xlane.xlu0 %2086
        %v2088 = vsub.f32 %v2040, %v2057
        %v2089 = vsub.f32 %v2041, %v2059
        %v2090 = vsub.f32 %v2042, %v2061
        %v2091 = vsub.f32 %v2043, %v2063
        %v2092 = vsub.f32 %v2044, %v2065
        %v2093 = vsub.f32 %v2045, %v2067
        %v2094 = vsub.f32 %v2046, %v2069
        %v2095 = vsub.f32 %v2047, %v2071
        %v2096 = vsub.f32 %v2048, %v2073
        %v2097 = vsub.f32 %v2049, %v2075
        %v2098 = vsub.f32 %v2050, %v2077
        %v2099 = vsub.f32 %v2051, %v2079
        %v2100 = vsub.f32 %v2052, %v2081
        %v2101 = vsub.f32 %v2053, %v2083
        %v2102 = vsub.f32 %v2054, %v2085
        %v2103 = vsub.f32 %v2055, %v2087
        %v2104 = vmul.f32 %v2088, 1.442695
        %v2105 = vpow.pop %v2104
        %v2106 = vmul.f32 %v2089, 1.442695
        %v2107 = vpow.pop %v2106
        %v2108 = vmul.f32 %v2090, 1.442695
        %v2109 = vpow.pop %v2108
        %v2110 = vmul.f32 %v2091, 1.442695
        %v2111 = vpow.pop %v2110
        %v2112 = vmul.f32 %v2092, 1.442695
        %v2113 = vpow.pop %v2112
        %v2114 = vmul.f32 %v2093, 1.442695
        %v2115 = vpow.pop %v2114
        %v2116 = vmul.f32 %v2094, 1.442695
        %v2117 = vpow.pop %v2116
        %v2118 = vmul.f32 %v2095, 1.442695
        %v2119 = vpow.pop %v2118
        %v2120 = vmul.f32 %v2096, 1.442695
        %v2121 = vpow.pop %v2120
        %v2122 = vmul.f32 %v2097, 1.442695
        %v2123 = vpow.pop %v2122
        %v2124 = vmul.f32 %v2098, 1.442695
        %v2125 = vpow.pop %v2124
        %v2126 = vmul.f32 %v2099, 1.442695
        %v2127 = vpow.pop %v2126
        %v2128 = vmul.f32 %v2100, 1.442695
        %v2129 = vpow.pop %v2128
        %v2130 = vmul.f32 %v2101, 1.442695
        %v2131 = vpow.pop %v2130
        %v2132 = vmul.f32 %v2102, 1.442695
        %v2133 = vpow.pop %v2132
        %v2134 = vmul.f32 %v2103, 1.442695
        %v2135 = vpow.pop %v2134
        %2136 = vadd.xlane.f32.xlu0 %v2105
        %v2137 = vpop.xlane.xlu0 %2136
        %2138 = vadd.xlane.f32.xlu0 %v2107
        %v2139 = vpop.xlane.xlu0 %2138
        %2140 = vadd.xlane.f32.xlu0 %v2109
        %v2141 = vpop.xlane.xlu0 %2140
        %2142 = vadd.xlane.f32.xlu0 %v2111
        %v2143 = vpop.xlane.xlu0 %2142
        %2144 = vadd.xlane.f32.xlu0 %v2113
        %v2145 = vpop.xlane.xlu0 %2144
        %2146 = vadd.xlane.f32.xlu0 %v2115
        %v2147 = vpop.xlane.xlu0 %2146
        %2148 = vadd.xlane.f32.xlu0 %v2117
        %v2149 = vpop.xlane.xlu0 %2148
        %2150 = vadd.xlane.f32.xlu0 %v2119
        %v2151 = vpop.xlane.xlu0 %2150
        %2152 = vadd.xlane.f32.xlu0 %v2121
        %v2153 = vpop.xlane.xlu0 %2152
        %2154 = vadd.xlane.f32.xlu0 %v2123
        %v2155 = vpop.xlane.xlu0 %2154
        %2156 = vadd.xlane.f32.xlu0 %v2125
        %v2157 = vpop.xlane.xlu0 %2156
        %2158 = vadd.xlane.f32.xlu0 %v2127
        %v2159 = vpop.xlane.xlu0 %2158
        %2160 = vadd.xlane.f32.xlu0 %v2129
        %v2161 = vpop.xlane.xlu0 %2160
        %2162 = vadd.xlane.f32.xlu0 %v2131
        %v2163 = vpop.xlane.xlu0 %2162
        %2164 = vadd.xlane.f32.xlu0 %v2133
        %v2165 = vpop.xlane.xlu0 %2164
        %2166 = vadd.xlane.f32.xlu0 %v2135
        %v2167 = vpop.xlane.xlu0 %2166
        %v2168 = vrcp.pop %v2137
        %v2169 = vmul.f32 %v2105, %v2168
        %v2170 = vrcp.pop %v2139
        %v2171 = vmul.f32 %v2107, %v2170
        %v2172 = vrcp.pop %v2141
        %v2173 = vmul.f32 %v2109, %v2172
        %v2174 = vrcp.pop %v2143
        %v2175 = vmul.f32 %v2111, %v2174
        %v2176 = vrcp.pop %v2145
        %v2177 = vmul.f32 %v2113, %v2176
        %v2178 = vrcp.pop %v2147
        %v2179 = vmul.f32 %v2115, %v2178
        %v2180 = vrcp.pop %v2149
        %v2181 = vmul.f32 %v2117, %v2180
        %v2182 = vrcp.pop %v2151
        %v2183 = vmul.f32 %v2119, %v2182
        %v2184 = vrcp.pop %v2153
        %v2185 = vmul.f32 %v2121, %v2184
        %v2186 = vrcp.pop %v2155
        %v2187 = vmul.f32 %v2123, %v2186
        %v2188 = vrcp.pop %v2157
        %v2189 = vmul.f32 %v2125, %v2188
        %v2190 = vrcp.pop %v2159
        %v2191 = vmul.f32 %v2127, %v2190
        %v2192 = vrcp.pop %v2161
        %v2193 = vmul.f32 %v2129, %v2192
        %v2194 = vrcp.pop %v2163
        %v2195 = vmul.f32 %v2131, %v2194
        %v2196 = vrcp.pop %v2165
        %v2197 = vmul.f32 %v2133, %v2196
        %v2198 = vrcp.pop %v2167
        %v2199 = vmul.f32 %v2135, %v2198
        %2200 = vmatprep.subr.mxu0 0.0
        %2201 = vmatpush1.msra.mxu0 %v1876
        %2202 = vmatprep.subr.mxu0 0.0
        %2203 = vmatpush1.msra.mxu0 %v1871
        %2204 = vmatprep.subr.mxu0 0.0
        %2205 = vmatpush1.msra.mxu0 %v1866
        %2206 = vmatprep.subr.mxu0 0.0
        %2207 = vmatpush1.msra.mxu0 %v1861
        %2208 = vmatprep.subr.mxu0 0.0
        %2209 = vmatpush1.msra.mxu0 %v1856
        %2210 = vmatprep.subr.mxu0 0.0
        %2211 = vmatpush1.msra.mxu0 %v1851
        %2212 = vmatprep.subr.mxu0 0.0
        %2213 = vmatpush1.msra.mxu0 %v1846
        %2214 = vmatprep.subr.mxu0 0.0
        %2215 = vmatpush1.msra.mxu0 %v1841
        %2216 = vmatprep.subr.mxu0 0.0
        %2217 = vmatpush1.msra.mxu0 %v1836
        %2218 = vmatprep.subr.mxu0 0.0
        %2219 = vmatpush1.msra.mxu0 %v1831
        %2220 = vmatprep.subr.mxu0 0.0
        %2221 = vmatpush1.msra.mxu0 %v1826
        %2222 = vmatprep.subr.mxu0 0.0
        %2223 = vmatpush1.msra.mxu0 %v1821
        %2224 = vmatprep.subr.mxu0 0.0
        %2225 = vmatpush1.msra.mxu0 %v1816
        %2226 = vmatprep.subr.mxu0 0.0
        %2227 = vmatpush1.msra.mxu0 %v1811
        %2228 = vmatprep.subr.mxu0 0.0
        %2229 = vmatpush1.msra.mxu0 %v1806
        %2230 = vmatprep.subr.mxu0 0.0
        %2231 = vmatpush1.msra.mxu0 %v1801
        %2232 = vmatprep.subr.mxu0 0.0
        %2233 = vmatpush2.msra.mxu0 0.0
        %2234 = vmatprep.subr.mxu0 0.0
        %2235 = vmatpush2.msra.mxu0 0.0
        %2236 = vmatprep.subr.mxu0 0.0
        %2237 = vmatpush2.msra.mxu0 0.0
        %2238 = vmatprep.subr.mxu0 0.0
        %2239 = vmatpush2.msra.mxu0 0.0
        %2240 = vmatprep.subr.mxu0 0.0
        %2241 = vmatpush2.msra.mxu0 0.0
        %2242 = vmatprep.subr.mxu0 0.0
        %2243 = vmatpush2.msra.mxu0 0.0
        %2244 = vmatprep.subr.mxu0 0.0
        %2245 = vmatpush2.msra.mxu0 0.0
        %2246 = vmatprep.subr.mxu0 0.0
        %2247 = vmatpush2.msra.mxu0 0.0
        %2248 = vmatprep.subr.mxu0 0.0
        %2249 = vmatpush2.msra.mxu0 0.0
        %2250 = vmatprep.subr.mxu0 0.0
        %2251 = vmatpush2.msra.mxu0 0.0
        %2252 = vmatprep.subr.mxu0 0.0
        %2253 = vmatpush2.msra.mxu0 0.0
        %2254 = vmatprep.subr.mxu0 0.0
        %2255 = vmatpush2.msra.mxu0 0.0
        %2256 = vmatprep.subr.mxu0 0.0
        %2257 = vmatpush2.msra.mxu0 0.0
        %2258 = vmatprep.subr.mxu0 0.0
        %2259 = vmatpush2.msra.mxu0 0.0
        %2260 = vmatprep.subr.mxu0 0.0
        %2261 = vmatpush2.msra.mxu0 0.0
        %2262 = vmatprep.subr.mxu0 0.0
        %2263 = vmatpush2.msra.mxu0 0.0
        %2264 = vmatprep.mubr.f32.mxu0 0.0
        %2265 = vmatmul.mubr.f32.gmra.mxu0 %v2169
        %v2266 = vpop.f32.mrf.mxu0
        %v2267 = vadd.f32 0.0, %v2266
        %v2268 = vpop.f32.mrf.mxu0
        %2269 = vmatprep.mubr.f32.mxu0 0.0
        %2270 = vmatmul.mubr.f32.gmra.mxu0 %v2171
        %v2271 = vpop.f32.mrf.mxu0
        %v2272 = vadd.f32 0.0, %v2271
        %v2273 = vpop.f32.mrf.mxu0
        %2274 = vmatprep.mubr.f32.mxu0 0.0
        %2275 = vmatmul.mubr.f32.gmra.mxu0 %v2173
        %v2276 = vpop.f32.mrf.mxu0
        %v2277 = vadd.f32 0.0, %v2276
        %v2278 = vpop.f32.mrf.mxu0
        %2279 = vmatprep.mubr.f32.mxu0 0.0
        %2280 = vmatmul.mubr.f32.gmra.mxu0 %v2175
        %v2281 = vpop.f32.mrf.mxu0
        %v2282 = vadd.f32 0.0, %v2281
        %v2283 = vpop.f32.mrf.mxu0
        %2284 = vmatprep.mubr.f32.mxu0 0.0
        %2285 = vmatmul.mubr.f32.gmra.mxu0 %v2177
        %v2286 = vpop.f32.mrf.mxu0
        %v2287 = vadd.f32 0.0, %v2286
        %v2288 = vpop.f32.mrf.mxu0
        %2289 = vmatprep.mubr.f32.mxu0 0.0
        %2290 = vmatmul.mubr.f32.gmra.mxu0 %v2179
        %v2291 = vpop.f32.mrf.mxu0
        %v2292 = vadd.f32 0.0, %v2291
        %v2293 = vpop.f32.mrf.mxu0
        %2294 = vmatprep.mubr.f32.mxu0 0.0
        %2295 = vmatmul.mubr.f32.gmra.mxu0 %v2181
        %v2296 = vpop.f32.mrf.mxu0
        %v2297 = vadd.f32 0.0, %v2296
        %v2298 = vpop.f32.mrf.mxu0
        %2299 = vmatprep.mubr.f32.mxu0 0.0
        %2300 = vmatmul.mubr.f32.gmra.mxu0 %v2183
        %v2301 = vpop.f32.mrf.mxu0
        %v2302 = vadd.f32 0.0, %v2301
        %v2303 = vpop.f32.mrf.mxu0
        %2304 = vmatprep.mubr.f32.mxu0 0.0
        %2305 = vmatmul.mubr.f32.gmra.mxu0 %v2185
        %v2306 = vpop.f32.mrf.mxu0
        %v2307 = vadd.f32 0.0, %v2306
        %v2308 = vpop.f32.mrf.mxu0
        %2309 = vmatprep.mubr.f32.mxu0 0.0
        %2310 = vmatmul.mubr.f32.gmra.mxu0 %v2187
        %v2311 = vpop.f32.mrf.mxu0
        %v2312 = vadd.f32 0.0, %v2311
        %v2313 = vpop.f32.mrf.mxu0
        %2314 = vmatprep.mubr.f32.mxu0 0.0
        %2315 = vmatmul.mubr.f32.gmra.mxu0 %v2189
        %v2316 = vpop.f32.mrf.mxu0
        %v2317 = vadd.f32 0.0, %v2316
        %v2318 = vpop.f32.mrf.mxu0
        %2319 = vmatprep.mubr.f32.mxu0 0.0
        %2320 = vmatmul.mubr.f32.gmra.mxu0 %v2191
        %v2321 = vpop.f32.mrf.mxu0
        %v2322 = vadd.f32 0.0, %v2321
        %v2323 = vpop.f32.mrf.mxu0
        %2324 = vmatprep.mubr.f32.mxu0 0.0
        %2325 = vmatmul.mubr.f32.gmra.mxu0 %v2193
        %v2326 = vpop.f32.mrf.mxu0
        %v2327 = vadd.f32 0.0, %v2326
        %v2328 = vpop.f32.mrf.mxu0
        %2329 = vmatprep.mubr.f32.mxu0 0.0
        %2330 = vmatmul.mubr.f32.gmra.mxu0 %v2195
        %v2331 = vpop.f32.mrf.mxu0
        %v2332 = vadd.f32 0.0, %v2331
        %v2333 = vpop.f32.mrf.mxu0
        %2334 = vmatprep.mubr.f32.mxu0 0.0
        %2335 = vmatmul.mubr.f32.gmra.mxu0 %v2197
        %v2336 = vpop.f32.mrf.mxu0
        %v2337 = vadd.f32 0.0, %v2336
        %v2338 = vpop.f32.mrf.mxu0
        %2339 = vmatprep.mubr.f32.mxu0 0.0
        %2340 = vmatmul.mubr.f32.gmra.mxu0 %v2199
        %v2341 = vpop.f32.mrf.mxu0
        %v2342 = vadd.f32 0.0, %v2341
        %v2343 = vpop.f32.mrf.mxu0
        %2344 = vdwg.mxu0
        %2345 = vst [vmem:[#allocation2 + $0x8] sm:$0xff] %v2267
        %2346 = vst [vmem:[#allocation2 + $0x18] sm:$0xff] %v2272
        %2347 = vst [vmem:[#allocation2 + $0x28] sm:$0xff] %v2277
        %2348 = vst [vmem:[#allocation2 + $0x38] sm:$0xff] %v2282
        %2349 = vst [vmem:[#allocation2 + $0x48] sm:$0xff] %v2287
        %2350 = vst [vmem:[#allocation2 + $0x58] sm:$0xff] %v2292
        %2351 = vst [vmem:[#allocation2 + $0x68] sm:$0xff] %v2297
        %2352 = vst [vmem:[#allocation2 + $0x78] sm:$0xff] %v2302
        %2353 = vst [vmem:[#allocation2 + $0x88] sm:$0xff] %v2307
        %2354 = vst [vmem:[#allocation2 + $0x98] sm:$0xff] %v2312
        %2355 = vst [vmem:[#allocation2 + $0xa8] sm:$0xff] %v2317
        %2356 = vst [vmem:[#allocation2 + $0xb8] sm:$0xff] %v2322
        %2357 = vst [vmem:[#allocation2 + $0xc8] sm:$0xff] %v2327
        %2358 = vst [vmem:[#allocation2 + $0xd8] sm:$0xff] %v2332
        %2359 = vst [vmem:[#allocation2 + $0xe8] sm:$0xff] %v2337
        %2360 = vst [vmem:[#allocation2 + $0xf8] sm:$0xff] %v2342
        %v2361 = vld [vmem:[#allocation2] sm:$0xff]
        %v2362 = vld [vmem:[#allocation2 + $0x8] sm:$0xff]
        %v2363 = vld [vmem:[#allocation2 + $0x10] sm:$0xff]
        %v2364 = vld [vmem:[#allocation2 + $0x18] sm:$0xff]
        %v2365 = vld [vmem:[#allocation2 + $0x20] sm:$0xff]
        %v2366 = vld [vmem:[#allocation2 + $0x28] sm:$0xff]
        %v2367 = vld [vmem:[#allocation2 + $0x30] sm:$0xff]
        %v2368 = vld [vmem:[#allocation2 + $0x38] sm:$0xff]
        %v2369 = vld [vmem:[#allocation2 + $0x40] sm:$0xff]
        %v2370 = vld [vmem:[#allocation2 + $0x48] sm:$0xff]
        %v2371 = vld [vmem:[#allocation2 + $0x50] sm:$0xff]
        %v2372 = vld [vmem:[#allocation2 + $0x58] sm:$0xff]
        %v2373 = vld [vmem:[#allocation2 + $0x60] sm:$0xff]
        %v2374 = vld [vmem:[#allocation2 + $0x68] sm:$0xff]
        %v2375 = vld [vmem:[#allocation2 + $0x70] sm:$0xff]
        %v2376 = vld [vmem:[#allocation2 + $0x78] sm:$0xff]
        %v2377 = vld [vmem:[#allocation2 + $0x80] sm:$0xff]
        %v2378 = vld [vmem:[#allocation2 + $0x88] sm:$0xff]
        %v2379 = vld [vmem:[#allocation2 + $0x90] sm:$0xff]
        %v2380 = vld [vmem:[#allocation2 + $0x98] sm:$0xff]
        %v2381 = vld [vmem:[#allocation2 + $0xa0] sm:$0xff]
        %v2382 = vld [vmem:[#allocation2 + $0xa8] sm:$0xff]
        %v2383 = vld [vmem:[#allocation2 + $0xb0] sm:$0xff]
        %v2384 = vld [vmem:[#allocation2 + $0xb8] sm:$0xff]
        %v2385 = vld [vmem:[#allocation2 + $0xc0] sm:$0xff]
        %v2386 = vld [vmem:[#allocation2 + $0xc8] sm:$0xff]
        %v2387 = vld [vmem:[#allocation2 + $0xd0] sm:$0xff]
        %v2388 = vld [vmem:[#allocation2 + $0xd8] sm:$0xff]
        %v2389 = vld [vmem:[#allocation2 + $0xe0] sm:$0xff]
        %v2390 = vld [vmem:[#allocation2 + $0xe8] sm:$0xff]
        %v2391 = vld [vmem:[#allocation2 + $0xf0] sm:$0xff]
        %v2392 = vld [vmem:[#allocation2 + $0xf8] sm:$0xff]
        %v2393 = vld [vmem:[#allocation8] sm:$0xff]
        %v2394 = vld [vmem:[#allocation8 + $0x8] sm:$0xff]
        %v2395 = vld [vmem:[#allocation8 + $0x10] sm:$0xff]
        %v2396 = vld [vmem:[#allocation8 + $0x18] sm:$0xff]
        %v2397 = vld [vmem:[#allocation8 + $0x20] sm:$0xff]
        %v2398 = vld [vmem:[#allocation8 + $0x28] sm:$0xff]
        %v2399 = vld [vmem:[#allocation8 + $0x30] sm:$0xff]
        %v2400 = vld [vmem:[#allocation8 + $0x38] sm:$0xff]
        %v2401 = vld [vmem:[#allocation8 + $0x40] sm:$0xff]
        %v2402 = vld [vmem:[#allocation8 + $0x48] sm:$0xff]
        %v2403 = vld [vmem:[#allocation8 + $0x50] sm:$0xff]
        %v2404 = vld [vmem:[#allocation8 + $0x58] sm:$0xff]
        %v2405 = vld [vmem:[#allocation8 + $0x60] sm:$0xff]
        %v2406 = vld [vmem:[#allocation8 + $0x68] sm:$0xff]
        %v2407 = vld [vmem:[#allocation8 + $0x70] sm:$0xff]
        %v2408 = vld [vmem:[#allocation8 + $0x78] sm:$0xff]
        %v2409 = vld [vmem:[#allocation8 + $0x80] sm:$0xff]
        %v2410 = vld [vmem:[#allocation8 + $0x88] sm:$0xff]
        %v2411 = vld [vmem:[#allocation8 + $0x90] sm:$0xff]
        %v2412 = vld [vmem:[#allocation8 + $0x98] sm:$0xff]
        %v2413 = vld [vmem:[#allocation8 + $0xa0] sm:$0xff]
        %v2414 = vld [vmem:[#allocation8 + $0xa8] sm:$0xff]
        %v2415 = vld [vmem:[#allocation8 + $0xb0] sm:$0xff]
        %v2416 = vld [vmem:[#allocation8 + $0xb8] sm:$0xff]
        %v2417 = vld [vmem:[#allocation8 + $0xc0] sm:$0xff]
        %v2418 = vld [vmem:[#allocation8 + $0xc8] sm:$0xff]
        %v2419 = vld [vmem:[#allocation8 + $0xd0] sm:$0xff]
        %v2420 = vld [vmem:[#allocation8 + $0xd8] sm:$0xff]
        %v2421 = vld [vmem:[#allocation8 + $0xe0] sm:$0xff]
        %v2422 = vld [vmem:[#allocation8 + $0xe8] sm:$0xff]
        %v2423 = vld [vmem:[#allocation8 + $0xf0] sm:$0xff]
        %v2424 = vld [vmem:[#allocation8 + $0xf8] sm:$0xff]
        %v2425 = vld [vmem:[#allocation8 + $0x100] sm:$0xff]
        %v2426 = vld [vmem:[#allocation8 + $0x108] sm:$0xff]
        %v2427 = vld [vmem:[#allocation8 + $0x110] sm:$0xff]
        %v2428 = vld [vmem:[#allocation8 + $0x118] sm:$0xff]
        %v2429 = vld [vmem:[#allocation8 + $0x120] sm:$0xff]
        %v2430 = vld [vmem:[#allocation8 + $0x128] sm:$0xff]
        %v2431 = vld [vmem:[#allocation8 + $0x130] sm:$0xff]
        %v2432 = vld [vmem:[#allocation8 + $0x138] sm:$0xff]
        %v2433 = vld [vmem:[#allocation8 + $0x140] sm:$0xff]
        %v2434 = vld [vmem:[#allocation8 + $0x148] sm:$0xff]
        %v2435 = vld [vmem:[#allocation8 + $0x150] sm:$0xff]
        %v2436 = vld [vmem:[#allocation8 + $0x158] sm:$0xff]
        %v2437 = vld [vmem:[#allocation8 + $0x160] sm:$0xff]
        %v2438 = vld [vmem:[#allocation8 + $0x168] sm:$0xff]
        %v2439 = vld [vmem:[#allocation8 + $0x170] sm:$0xff]
        %v2440 = vld [vmem:[#allocation8 + $0x178] sm:$0xff]
        %v2441 = vld [vmem:[#allocation8 + $0x180] sm:$0xff]
        %v2442 = vld [vmem:[#allocation8 + $0x188] sm:$0xff]
        %v2443 = vld [vmem:[#allocation8 + $0x190] sm:$0xff]
        %v2444 = vld [vmem:[#allocation8 + $0x198] sm:$0xff]
        %v2445 = vld [vmem:[#allocation8 + $0x1a0] sm:$0xff]
        %v2446 = vld [vmem:[#allocation8 + $0x1a8] sm:$0xff]
        %v2447 = vld [vmem:[#allocation8 + $0x1b0] sm:$0xff]
        %v2448 = vld [vmem:[#allocation8 + $0x1b8] sm:$0xff]
        %v2449 = vld [vmem:[#allocation8 + $0x1c0] sm:$0xff]
        %v2450 = vld [vmem:[#allocation8 + $0x1c8] sm:$0xff]
        %v2451 = vld [vmem:[#allocation8 + $0x1d0] sm:$0xff]
        %v2452 = vld [vmem:[#allocation8 + $0x1d8] sm:$0xff]
        %v2453 = vld [vmem:[#allocation8 + $0x1e0] sm:$0xff]
        %v2454 = vld [vmem:[#allocation8 + $0x1e8] sm:$0xff]
        %v2455 = vld [vmem:[#allocation8 + $0x1f0] sm:$0xff]
        %v2456 = vld [vmem:[#allocation8 + $0x1f8] sm:$0xff]
        %v2457 = vld [vmem:[%s3] sm:$0x3]
        %v2459 = vlaneseq
        %v2460 = vshrl.u32 %v2459, 7
        %v2461 = vsub.s32 0, %v2460
        %v2462 = vrot.slane %v2457, %v2461
        %v2463 = vlaneseq
        %v2464 = vshrl.u32 %v2463, 7
        %v2465 = vsub.s32 1, %v2464
        %v2466 = vrot.slane %v2457, %v2465
        %2469 = vmatprep.subr.mxu0 %v2424
        %2470 = vmatpush1.msra.mxu0 %v2423
        %2471 = vmatprep.subr.mxu0 %v2422
        %2472 = vmatpush1.msra.mxu0 %v2421
        %2473 = vmatprep.subr.mxu0 %v2420
        %2474 = vmatpush1.msra.mxu0 %v2419
        %2475 = vmatprep.subr.mxu0 %v2418
        %2476 = vmatpush1.msra.mxu0 %v2417
        %2477 = vmatprep.subr.mxu0 %v2416
        %2478 = vmatpush1.msra.mxu0 %v2415
        %2479 = vmatprep.subr.mxu0 %v2414
        %2480 = vmatpush1.msra.mxu0 %v2413
        %2481 = vmatprep.subr.mxu0 %v2412
        %2482 = vmatpush1.msra.mxu0 %v2411
        %2483 = vmatprep.subr.mxu0 %v2410
        %2484 = vmatpush1.msra.mxu0 %v2409
        %2485 = vmatprep.subr.mxu0 %v2408
        %2486 = vmatpush1.msra.mxu0 %v2407
        %2487 = vmatprep.subr.mxu0 %v2406
        %2488 = vmatpush1.msra.mxu0 %v2405
        %2489 = vmatprep.subr.mxu0 %v2404
        %2490 = vmatpush1.msra.mxu0 %v2403
        %2491 = vmatprep.subr.mxu0 %v2402
        %2492 = vmatpush1.msra.mxu0 %v2401
        %2493 = vmatprep.subr.mxu0 %v2400
        %2494 = vmatpush1.msra.mxu0 %v2399
        %2495 = vmatprep.subr.mxu0 %v2398
        %2496 = vmatpush1.msra.mxu0 %v2397
        %2497 = vmatprep.subr.mxu0 %v2396
        %2498 = vmatpush1.msra.mxu0 %v2395
        %2499 = vmatprep.subr.mxu0 %v2394
        %2500 = vmatpush1.msra.mxu0 %v2393
        %2501 = vmatprep.subr.mxu0 %v2456
        %2502 = vmatpush2.msra.mxu0 %v2455
        %2503 = vmatprep.subr.mxu0 %v2454
        %2504 = vmatpush2.msra.mxu0 %v2453
        %2505 = vmatprep.subr.mxu0 %v2452
        %2506 = vmatpush2.msra.mxu0 %v2451
        %2507 = vmatprep.subr.mxu0 %v2450
        %2508 = vmatpush2.msra.mxu0 %v2449
        %2509 = vmatprep.subr.mxu0 %v2448
        %2510 = vmatpush2.msra.mxu0 %v2447
        %2511 = vmatprep.subr.mxu0 %v2446
        %2512 = vmatpush2.msra.mxu0 %v2445
        %2513 = vmatprep.subr.mxu0 %v2444
        %2514 = vmatpush2.msra.mxu0 %v2443
        %2515 = vmatprep.subr.mxu0 %v2442
        %2516 = vmatpush2.msra.mxu0 %v2441
        %2517 = vmatprep.subr.mxu0 %v2440
        %2518 = vmatpush2.msra.mxu0 %v2439
        %2519 = vmatprep.subr.mxu0 %v2438
        %2520 = vmatpush2.msra.mxu0 %v2437
        %2521 = vmatprep.subr.mxu0 %v2436
        %2522 = vmatpush2.msra.mxu0 %v2435
        %2523 = vmatprep.subr.mxu0 %v2434
        %2524 = vmatpush2.msra.mxu0 %v2433
        %2525 = vmatprep.subr.mxu0 %v2432
        %2526 = vmatpush2.msra.mxu0 %v2431
        %2527 = vmatprep.subr.mxu0 %v2430
        %2528 = vmatpush2.msra.mxu0 %v2429
        %2529 = vmatprep.subr.mxu0 %v2428
        %2530 = vmatpush2.msra.mxu0 %v2427
        %2531 = vmatprep.subr.mxu0 %v2426
        %2532 = vmatpush2.msra.mxu0 %v2425
        %2533 = vmatprep.mubr.f32.mxu0 %v2362
        %2534 = vmatmul.mubr.f32.gmra.mxu0 %v2361
        %v2535 = vpop.f32.mrf.mxu0
        %v2536 = vadd.f32 %v2462, %v2535
        %v2537 = vpop.f32.mrf.mxu0
        %v2538 = vadd.f32 %v2466, %v2537
        %2539 = vmatprep.mubr.f32.mxu0 %v2364
        %2540 = vmatmul.mubr.f32.gmra.mxu0 %v2363
        %v2541 = vpop.f32.mrf.mxu0
        %v2542 = vadd.f32 %v2462, %v2541
        %v2543 = vpop.f32.mrf.mxu0
        %v2544 = vadd.f32 %v2466, %v2543
        %2545 = vmatprep.mubr.f32.mxu0 %v2366
        %2546 = vmatmul.mubr.f32.gmra.mxu0 %v2365
        %v2547 = vpop.f32.mrf.mxu0
        %v2548 = vadd.f32 %v2462, %v2547
        %v2549 = vpop.f32.mrf.mxu0
        %v2550 = vadd.f32 %v2466, %v2549
        %2551 = vmatprep.mubr.f32.mxu0 %v2368
        %2552 = vmatmul.mubr.f32.gmra.mxu0 %v2367
        %v2553 = vpop.f32.mrf.mxu0
        %v2554 = vadd.f32 %v2462, %v2553
        %v2555 = vpop.f32.mrf.mxu0
        %v2556 = vadd.f32 %v2466, %v2555
        %2557 = vmatprep.mubr.f32.mxu0 %v2370
        %2558 = vmatmul.mubr.f32.gmra.mxu0 %v2369
        %v2559 = vpop.f32.mrf.mxu0
        %v2560 = vadd.f32 %v2462, %v2559
        %v2561 = vpop.f32.mrf.mxu0
        %v2562 = vadd.f32 %v2466, %v2561
        %2563 = vmatprep.mubr.f32.mxu0 %v2372
        %2564 = vmatmul.mubr.f32.gmra.mxu0 %v2371
        %v2565 = vpop.f32.mrf.mxu0
        %v2566 = vadd.f32 %v2462, %v2565
        %v2567 = vpop.f32.mrf.mxu0
        %v2568 = vadd.f32 %v2466, %v2567
        %2569 = vmatprep.mubr.f32.mxu0 %v2374
        %2570 = vmatmul.mubr.f32.gmra.mxu0 %v2373
        %v2571 = vpop.f32.mrf.mxu0
        %v2572 = vadd.f32 %v2462, %v2571
        %v2573 = vpop.f32.mrf.mxu0
        %v2574 = vadd.f32 %v2466, %v2573
        %2575 = vmatprep.mubr.f32.mxu0 %v2376
        %2576 = vmatmul.mubr.f32.gmra.mxu0 %v2375
        %v2577 = vpop.f32.mrf.mxu0
        %v2578 = vadd.f32 %v2462, %v2577
        %v2579 = vpop.f32.mrf.mxu0
        %v2580 = vadd.f32 %v2466, %v2579
        %2581 = vmatprep.mubr.f32.mxu0 %v2378
        %2582 = vmatmul.mubr.f32.gmra.mxu0 %v2377
        %v2583 = vpop.f32.mrf.mxu0
        %v2584 = vadd.f32 %v2462, %v2583
        %v2585 = vpop.f32.mrf.mxu0
        %v2586 = vadd.f32 %v2466, %v2585
        %2587 = vmatprep.mubr.f32.mxu0 %v2380
        %2588 = vmatmul.mubr.f32.gmra.mxu0 %v2379
        %v2589 = vpop.f32.mrf.mxu0
        %v2590 = vadd.f32 %v2462, %v2589
        %v2591 = vpop.f32.mrf.mxu0
        %v2592 = vadd.f32 %v2466, %v2591
        %2593 = vmatprep.mubr.f32.mxu0 %v2382
        %2594 = vmatmul.mubr.f32.gmra.mxu0 %v2381
        %v2595 = vpop.f32.mrf.mxu0
        %v2596 = vadd.f32 %v2462, %v2595
        %v2597 = vpop.f32.mrf.mxu0
        %v2598 = vadd.f32 %v2466, %v2597
        %2599 = vmatprep.mubr.f32.mxu0 %v2384
        %2600 = vmatmul.mubr.f32.gmra.mxu0 %v2383
        %v2601 = vpop.f32.mrf.mxu0
        %v2602 = vadd.f32 %v2462, %v2601
        %v2603 = vpop.f32.mrf.mxu0
        %v2604 = vadd.f32 %v2466, %v2603
        %2605 = vmatprep.mubr.f32.mxu0 %v2386
        %2606 = vmatmul.mubr.f32.gmra.mxu0 %v2385
        %v2607 = vpop.f32.mrf.mxu0
        %v2608 = vadd.f32 %v2462, %v2607
        %v2609 = vpop.f32.mrf.mxu0
        %v2610 = vadd.f32 %v2466, %v2609
        %2611 = vmatprep.mubr.f32.mxu0 %v2388
        %2612 = vmatmul.mubr.f32.gmra.mxu0 %v2387
        %v2613 = vpop.f32.mrf.mxu0
        %v2614 = vadd.f32 %v2462, %v2613
        %v2615 = vpop.f32.mrf.mxu0
        %v2616 = vadd.f32 %v2466, %v2615
        %2617 = vmatprep.mubr.f32.mxu0 %v2390
        %2618 = vmatmul.mubr.f32.gmra.mxu0 %v2389
        %v2619 = vpop.f32.mrf.mxu0
        %v2620 = vadd.f32 %v2462, %v2619
        %v2621 = vpop.f32.mrf.mxu0
        %v2622 = vadd.f32 %v2466, %v2621
        %2623 = vmatprep.mubr.f32.mxu0 %v2392
        %2624 = vmatmul.mubr.f32.gmra.mxu0 %v2391
        %v2625 = vpop.f32.mrf.mxu0
        %v2626 = vadd.f32 %v2462, %v2625
        %v2627 = vpop.f32.mrf.mxu0
        %v2628 = vadd.f32 %v2466, %v2627
        %2629 = vdwg.mxu0
        %2630 = vst [vmem:[%s286] sm:$0xff] %v2536
        %2631 = vst [vmem:[%s286 + $0x8] sm:$0xff] %v2538
        %2632 = vst [vmem:[%s286 + $0x10] sm:$0xff] %v2542
        %2633 = vst [vmem:[%s286 + $0x18] sm:$0xff] %v2544
        %2634 = vst [vmem:[%s286 + $0x20] sm:$0xff] %v2548
        %2635 = vst [vmem:[%s286 + $0x28] sm:$0xff] %v2550
        %2636 = vst [vmem:[%s286 + $0x30] sm:$0xff] %v2554
        %2637 = vst [vmem:[%s286 + $0x38] sm:$0xff] %v2556
        %2638 = vst [vmem:[%s286 + $0x40] sm:$0xff] %v2560
        %2639 = vst [vmem:[%s286 + $0x48] sm:$0xff] %v2562
        %2640 = vst [vmem:[%s286 + $0x50] sm:$0xff] %v2566
        %2641 = vst [vmem:[%s286 + $0x58] sm:$0xff] %v2568
        %2642 = vst [vmem:[%s286 + $0x60] sm:$0xff] %v2572
        %2643 = vst [vmem:[%s286 + $0x68] sm:$0xff] %v2574
        %2644 = vst [vmem:[%s286 + $0x70] sm:$0xff] %v2578
        %2645 = vst [vmem:[%s286 + $0x78] sm:$0xff] %v2580
        %2646 = vst [vmem:[%s286 + $0x80] sm:$0xff] %v2584
        %2647 = vst [vmem:[%s286 + $0x88] sm:$0xff] %v2586
        %2648 = vst [vmem:[%s286 + $0x90] sm:$0xff] %v2590
        %2649 = vst [vmem:[%s286 + $0x98] sm:$0xff] %v2592
        %2650 = vst [vmem:[%s286 + $0xa0] sm:$0xff] %v2596
        %2651 = vst [vmem:[%s286 + $0xa8] sm:$0xff] %v2598
        %2652 = vst [vmem:[%s286 + $0xb0] sm:$0xff] %v2602
        %2653 = vst [vmem:[%s286 + $0xb8] sm:$0xff] %v2604
        %2654 = vst [vmem:[%s286 + $0xc0] sm:$0xff] %v2608
        %2655 = vst [vmem:[%s286 + $0xc8] sm:$0xff] %v2610
        %2656 = vst [vmem:[%s286 + $0xd0] sm:$0xff] %v2614
        %2657 = vst [vmem:[%s286 + $0xd8] sm:$0xff] %v2616
        %2658 = vst [vmem:[%s286 + $0xe0] sm:$0xff] %v2620
        %2659 = vst [vmem:[%s286 + $0xe8] sm:$0xff] %v2622
        %2660 = vst [vmem:[%s286 + $0xf0] sm:$0xff] %v2626
        %2661 = vst [vmem:[%s286 + $0xf8] sm:$0xff] %v2628
        %s2662 = sand.u32 %s142, 1
        %s2663 = scalar_lea.sflag [#allocation5], %s2662
        %s2664 = sand.u32 %s142, 1
        %s2665 = smul.addr %s2664, 256
        %s2666 = scalar_lea.vmem [#allocation11], %s2665
        // Predicated region
        $region57: #{custom_attention_pallas.1} parent=39 // pred_check
          %p2667 = pneg %p152
        $region58: #{custom_attention_pallas.1} parent=39 // pred_check_branch
          %2669 = sbr.rel (%p2667) target = $region60
        $region59: #{custom_attention_pallas.1} parent=39 // pred_region
          %s2671 = ssub.s32 4096, 4096
          %2672 = vsyncadd %s2663, %s2671
          %s2673 = smul.addr %s24, 32
          %s2674 = smul.addr %s2673, 128
          %s2675 = scalar_lea.hbm %s5, %s2674
          %s2676 = sshll.u32 %s2666, 4
          %s2677 = int_to_ptr.vmem [resolvable:$true] %s2676
          %2682 = dma.vmem_to_hbm [thread:$0]  %s2677, 4096, %s2675, %s2663, 256, 256, 16
        $region60: #{custom_attention_pallas.1} parent=39 // pred_fallthru
          _
      $region40: #{custom_attention_pallas.1} parent=5 // pred_fallthru
        _
      %p2683 = scmp.le.s32.totalorder 2, %s19
      // Predicated region
      $region61: #{custom_attention_pallas.1} parent=5 // pred_check
        %p2684 = pneg %p2683
      $region62: #{custom_attention_pallas.1} parent=5 // pred_check_branch
        %2686 = sbr.rel (%p2684) target = $region64
      $region63: #{custom_attention_pallas.1} parent=5 // pred_region
        %s2687 = ssub.s32 %s19, 2
        // Predicated region
        $region65: #{custom_attention_pallas.1} parent=63 // pred_check
          %p2688 = pneg %p158
        $region66: #{custom_attention_pallas.1} parent=63 // pred_check_branch
          %2690 = sbr.rel (%p2688) target = $region68
        $region67: #{custom_attention_pallas.1} parent=63 // pred_region
          %s2691 = sand.u32 %s143, 1
          %s2692 = scalar_lea.sflag [#allocation5], %s2691
          %s2693 = sand.u32 %s143, 1
          %s2694 = smul.addr %s2693, 256
          %s2695 = scalar_lea.vmem [#allocation11], %s2694
          %2696 = dma.done %s2692, 4096
        $region68: #{custom_attention_pallas.1} parent=63 // pred_fallthru
          _
      $region64: #{custom_attention_pallas.1} parent=5 // pred_fallthru
        _
    $region6: #{custom_attention_pallas.1} parent=1 // loop_footer
      %s23 = sadd.s32 1, %s19
    $region7: #{custom_attention_pallas.1} parent=1 // loop_footer_branch
      %18 = sbr.rel target = $region3
    $region8: #{custom_attention_pallas.1} parent=1 // loop_exit
      _
    %2697 = vsyncpa [#allocation4], 1
    %s2698 = scalar_lea.sflag [#allocation4], 1
    %2699 = vsyncpa %s2698, 1
    %2700 = vsyncpa [#allocation7], 1
    %2701 = vsyncpa [#allocation10], 1
    %2702 = vsyncpa [#allocation5], 1
    %s2703 = scalar_lea.sflag [#allocation5], 1
    %2704 = vsyncpa %s2703, 1

</llo_original>
